<compile_context>
chip_gen: v7x
topology: tpu7x:2x2x1
jax: 0.10.0
libtpu: 0.0.40
codegen_flags: <defaults>
</compile_context>

<pallas_src>
import jax
import jax.numpy as jnp
from jax.experimental import pallas as pl
from jax.experimental.pallas import tpu as pltpu


# ----------------------------- Pallas kernel ------------------------------ #

def _student_vae_kernel(
    x_ref, eps_ref,
    wex_ref, be_ref,
    wmulv_ref, bmulv_ref,
    wdz_ref, bd_ref,
    wo_ref, bo_ref,
    logits_ref, latent_ref,
):
    """Fused conditional-VAE student forward for one batch tile.

    x:    [TB, D]   flattened NCHW input (f32, cast to bf16 for the MXU)
    eps:  [TB, L]   reparameterization noise (f32)
    weights (wex/wmulv/wdz/wo) are bf16; biases (condition already folded in)
    are f32.  Outputs: logits [TB, D] f32, packed latent [TB, 4L] f32
    laid out as [mu | logvar | z | std] (lane-dense: 4*L == 128).
    """
    L = eps_ref.shape[-1]

    # --- encoder: h = relu(x @ We_x + be_eff) ---
    x = x_ref[...].astype(jnp.bfloat16)
    h = jnp.dot(x, wex_ref[...], preferred_element_type=jnp.float32) + be_ref[...]
    h = jnp.maximum(h, 0.0)

    # --- fused latent head: [mu | logvar] = h @ W_mulv + b_mulv ---
    mulv = (jnp.dot(h.astype(jnp.bfloat16), wmulv_ref[...],
                    preferred_element_type=jnp.float32) + bmulv_ref[...])
    mu = mulv[:, :L]
    logvar = mulv[:, L:]

    # --- reparameterization (f32 tail): z = mu + exp(0.5*logvar) * eps ---
    # TODO(synk): if the original student uses z = mu at eval time, gate this.
    std = jnp.exp(0.5 * logvar)
    z = mu + std * eps_ref[...]

    # --- decoder: hd = relu(z @ Wd_z + bd_eff) ---
    hd = (jnp.dot(z.astype(jnp.bfloat16), wdz_ref[...],
                  preferred_element_type=jnp.float32) + bd_ref[...])
    hd = jnp.maximum(hd, 0.0)

    # --- reconstruction logits (sigmoid applied outside; exact semantics) ---
    logits = (jnp.dot(hd.astype(jnp.bfloat16), wo_ref[...],
                      preferred_element_type=jnp.float32) + bo_ref[...])
    logits_ref[...] = logits

    # --- packed, lane-dense latent output ---
    latent_ref[:, 0:2 * L] = mulv          # [mu | logvar]
    latent_ref[:, 2 * L:3 * L] = z
    latent_ref[:, 3 * L:4 * L] = std


# --------------------------- JAX-side wrapper ------------------------------ #

def _round_up(n, m):
    return ((n + m - 1) // m) * m


@jax.jit
def _student_forward(x_flat, eps, wex, be_eff, wmulv, bmulv, wdz, bd_eff, wo, bo):
    B, D = x_flat.shape
    L = eps.shape[1]
    H = wex.shape[1]

    # Batch tile: multiple of 16 (bf16 sublane pack), capped at 256 rows.
    TB_MAX = 256
    TB = TB_MAX if B >= TB_MAX else _round_up(max(B, 1), 16)
    B_pad = _round_up(B, TB)
    if B_pad != B:
        x_flat = jnp.pad(x_flat, ((0, B_pad - B), (0, 0)))
        eps = jnp.pad(eps, ((0, B_pad - B), (0, 0)))

    grid = (B_pad // TB,)

    def row_spec(feat):
        return pl.BlockSpec((TB, feat), lambda i: (i, 0))

    def const_spec(shape):
        # Constant block index -> weight stays VMEM-resident across the grid.
        return pl.BlockSpec(shape, lambda i: (0, 0))

    logits_pad, latent_pad = pl.pallas_call(
        _student_vae_kernel,
        out_shape=(
            jax.ShapeDtypeStruct((B_pad, D), jnp.float32),       # logits
            jax.ShapeDtypeStruct((B_pad, 4 * L), jnp.float32),   # [mu|logvar|z|std]
        ),
        grid=grid,
        in_specs=[
            row_spec(D),             # x
            row_spec(L),             # eps
            const_spec((D, H)),      # wex      (bf16)
            const_spec((1, H)),      # be_eff   (f32, condition folded in)
            const_spec((H, 2 * L)),  # wmulv    (bf16)
            const_spec((1, 2 * L)),  # bmulv
            const_spec((L, H)),      # wdz      (bf16)
            const_spec((1, H)),      # bd_eff   (f32, condition folded in)
            const_spec((H, D)),      # wo       (bf16)
            const_spec((1, D)),      # bo
        ],
        out_specs=(row_spec(D), row_spec(4 * L)),
        compiler_params=pltpu.CompilerParams(
            dimension_semantics=("parallel",),   # 2 TCs on v7x; no-op v5e/v6e
            vmem_limit_bytes=32 << 20,           # actual footprint is a few MiB
        ),
    )(x_flat, eps, wex, be_eff, wmulv, bmulv, wdz, bd_eff, wo, bo)

    logits = logits_pad[:B]
    latent = latent_pad[:B]
    mu = latent[:, :L]
    logvar = latent[:, L:2 * L]
    z = latent[:, 2 * L:3 * L]
    return logits, mu, logvar, z


class StudentTeacherPallas:
    """JAX/Pallas equivalent of StudentTeacher.forward()."""

    def __init__(self, in_channels=4, spatial=16, hidden=128, latent=32,
                 num_conditions=2, nll_type="bernoulli", seed=0):
        assert nll_type == "bernoulli"
        self.C, self.HW = in_channels, spatial
        self.D = in_channels * spatial * spatial
        self.H = hidden
        self.L = latent
        self.Ccond = num_conditions
        self.nll_type = nll_type
        self.continual_step = 0

        # Deterministic synthetic parameter init (no checkpoints).
        key = jax.random.PRNGKey(seed)
        ks = jax.random.split(key, 8)

        def init(k, shape, fan_in):
            return (jax.random.normal(k, shape, jnp.float32)
                    * (1.0 / jnp.sqrt(jnp.float32(fan_in))))

        D, H, L, Cc = self.D, self.H, self.L, self.Ccond
        # Matmul weights stored in bf16 (MXU-native); condition/bias terms f32.
        self.wex = init(ks[0], (D, H), D).astype(jnp.bfloat16)
        self.wec = init(ks[1], (Cc, H), Cc)                       # folded per step
        self.be = jnp.zeros((1, H), jnp.float32)
        wmu = init(ks[2], (H, L), H)
        wlv = init(ks[3], (H, L), H)
        self.wmulv = jnp.concatenate([wmu, wlv], axis=-1).astype(jnp.bfloat16)
        self.bmulv = jnp.zeros((1, 2 * L), jnp.float32)
        self.wdz = init(ks[4], (L, H), L).astype(jnp.bfloat16)
        self.wdc = init(ks[5], (Cc, H), Cc)                       # folded per step
        self.bd = jnp.zeros((1, H), jnp.float32)
        self.wo = init(ks[6], (H, D), H).astype(jnp.bfloat16)
        self.bo = jnp.zeros((1, D), jnp.float32)
        self._eps_key = ks[7]

    def generate_condition(self, batch_size, step_index):
        cond = jnp.zeros((batch_size, self.Ccond), jnp.float32)
        return cond.at[:, step_index].set(1.0)

    def forward(self, x):
        """x: [B, C, H, W] float32 (NCHW, matching PyTorch)."""
        B = x.shape[0]
        x_flat = x.reshape(B, self.D)

        # Original module: condition = generate_condition(x.shape[0], 0)
        step = 0
        condition = self.generate_condition(B, step)

        # One-hot condition @ W is a row gather -> fold into the biases.
        be_eff = self.be + self.wec[step:step + 1, :]
        bd_eff = self.bd + self.wdc[step:step + 1, :]

        # Fresh reparameterization noise per call (torch.randn_like semantics).
        self._eps_key, sub = jax.random.split(self._eps_key)
        eps = jax.random.normal(sub, (B, self.L), jnp.float32)

        logits, mu, logvar, z = _student_forward(
            x_flat, eps, self.wex, be_eff, self.wmulv, self.bmulv,
            self.wdz, bd_eff, self.wo, self.bo)

        x_reconstr_logits = logits.reshape(x.shape)
        # nll_activation('bernoulli') == sigmoid; applied here on f32 logits so
        # only one [B, D] f32 tensor leaves the kernel.
        x_reconstr = jax.nn.sigmoid(x_reconstr_logits)

        params_student = {"mu": mu, "logvar": logvar, "z": z,
                          "condition": condition}
        ret_map = {
            "student": {
                "params": params_student,
                "x_reconstr": x_reconstr,
                "x_reconstr_logits": x_reconstr_logits,
            },
            "x": x,
        }
        return ret_map


# --------------------------------- main ------------------------------------ #

if __name__ == "__main__":
    B, C, Hs, Ws = 2, 4, 16, 16
    key = jax.random.PRNGKey(0)
    x = jax.random.uniform(key, (B, C, Hs, Ws), jnp.float32)

    model = StudentTeacherPallas(in_channels=C, spatial=Hs,
                                 hidden=128, latent=32, num_conditions=2)
    out = model.forward(x)
    jax.block_until_ready(out)

    # light sanity checks
    assert out["student"]["x_reconstr_logits"].shape == (B, C, Hs, Ws)
    assert out["student"]["x_reconstr"].shape == (B, C, Hs, Ws)
    assert out["student"]["params"]["mu"].shape == (B, 32)
    assert out["student"]["params"]["logvar"].shape == (B, 32)
    assert out["student"]["params"]["z"].shape == (B, 32)
    r = out["student"]["x_reconstr"]
    assert bool(jnp.all((r >= 0.0) & (r <= 1.0)))
    assert bool(jnp.all(jnp.isfinite(out["student"]["x_reconstr_logits"])))

    print("KERNEL_OK")
</pallas_src>

<mosaic_0001>
module attributes {stable_mosaic.version = 11 : i64} {
  func.func @_student_vae_kernel(%arg0: i32, %arg1: memref<16x1024xf32, #tpu.memory_space<vmem>>, %arg2: memref<16x32xf32, #tpu.memory_space<vmem>>, %arg3: memref<1024x128xbf16, #tpu.memory_space<vmem>>, %arg4: memref<1x128xf32, #tpu.memory_space<vmem>>, %arg5: memref<128x64xbf16, #tpu.memory_space<vmem>>, %arg6: memref<1x64xf32, #tpu.memory_space<vmem>>, %arg7: memref<32x128xbf16, #tpu.memory_space<vmem>>, %arg8: memref<1x128xf32, #tpu.memory_space<vmem>>, %arg9: memref<128x1024xbf16, #tpu.memory_space<vmem>>, %arg10: memref<1x1024xf32, #tpu.memory_space<vmem>>, %arg11: memref<16x1024xf32, #tpu.memory_space<vmem>>, %arg12: memref<16x128xf32, #tpu.memory_space<vmem>>) attributes {dimension_semantics = [#tpu.dimension_semantics<parallel>], iteration_bounds = array<i64: 1>, scalar_prefetch = 0 : i64, scratch_operands = 0 : i64, tpu.core_type = #tpu.core_type<tc>, window_params = [{transform_indices = @transform_0, window_bounds = array<i64: 16, 1024>}, {transform_indices = @transform_1, window_bounds = array<i64: 16, 32>}, {pipeline_mode = #tpu.pipeline_mode<synchronous>, transform_indices = @transform_2, window_bounds = array<i64: 1024, 128>}, {pipeline_mode = #tpu.pipeline_mode<synchronous>, transform_indices = @transform_3, window_bounds = array<i64: 1, 128>}, {pipeline_mode = #tpu.pipeline_mode<synchronous>, transform_indices = @transform_4, window_bounds = array<i64: 128, 64>}, {pipeline_mode = #tpu.pipeline_mode<synchronous>, transform_indices = @transform_5, window_bounds = array<i64: 1, 64>}, {pipeline_mode = #tpu.pipeline_mode<synchronous>, transform_indices = @transform_6, window_bounds = array<i64: 32, 128>}, {pipeline_mode = #tpu.pipeline_mode<synchronous>, transform_indices = @transform_7, window_bounds = array<i64: 1, 128>}, {pipeline_mode = #tpu.pipeline_mode<synchronous>, transform_indices = @transform_8, window_bounds = array<i64: 128, 1024>}, {pipeline_mode = #tpu.pipeline_mode<synchronous>, transform_indices = @transform_9, window_bounds = array<i64: 1, 1024>}, {transform_indices = @transform_10, window_bounds = array<i64: 16, 1024>}, {transform_indices = @transform_11, window_bounds = array<i64: 16, 128>}]} {
    %c0 = arith.constant 0 : index
    %c0_0 = arith.constant 0 : index
    %0 = vector.load %arg1[%c0, %c0_0] : memref<16x1024xf32, #tpu.memory_space<vmem>>, vector<16x1024xf32>
    %1 = arith.truncf %0 : vector<16x1024xf32> to vector<16x1024xbf16>
    %c0_1 = arith.constant 0 : index
    %c0_2 = arith.constant 0 : index
    %2 = vector.load %arg3[%c0_1, %c0_2] : memref<1024x128xbf16, #tpu.memory_space<vmem>>, vector<1024x128xbf16>
    %cst = arith.constant dense<0.000000e+00> : vector<16x128xf32>
    %3 = tpu.matmul %1, %2, %cst {dimension_numbers = #tpu.dot_dimension_numbers<[1], [0], [0], [1], [0, 0, 1, 1], [], []>} : vector<16x1024xbf16>, vector<1024x128xbf16>, vector<16x128xf32> -> vector<16x128xf32>
    %c0_3 = arith.constant 0 : index
    %c0_4 = arith.constant 0 : index
    %4 = vector.load %arg4[%c0_3, %c0_4] : memref<1x128xf32, #tpu.memory_space<vmem>>, vector<1x128xf32>
    %5 = vector.broadcast %4 : vector<1x128xf32> to vector<16x128xf32>
    %6 = arith.addf %3, %5 : vector<16x128xf32>
    %cst_5 = arith.constant 0.000000e+00 : f32
    %7 = vector.broadcast %cst_5 : f32 to vector<16x128xf32>
    %8 = arith.maximumf %6, %7 : vector<16x128xf32>
    %9 = arith.truncf %8 : vector<16x128xf32> to vector<16x128xbf16>
    %c0_6 = arith.constant 0 : index
    %c0_7 = arith.constant 0 : index
    %10 = vector.load %arg5[%c0_6, %c0_7] : memref<128x64xbf16, #tpu.memory_space<vmem>>, vector<128x64xbf16>
    %cst_8 = arith.constant dense<0.000000e+00> : vector<16x64xf32>
    %11 = tpu.matmul %9, %10, %cst_8 {dimension_numbers = #tpu.dot_dimension_numbers<[1], [0], [0], [1], [0, 0, 1, 1], [], []>} : vector<16x128xbf16>, vector<128x64xbf16>, vector<16x64xf32> -> vector<16x64xf32>
    %c0_9 = arith.constant 0 : index
    %c0_10 = arith.constant 0 : index
    %12 = vector.load %arg6[%c0_9, %c0_10] : memref<1x64xf32, #tpu.memory_space<vmem>>, vector<1x64xf32>
    %13 = vector.broadcast %12 : vector<1x64xf32> to vector<16x64xf32>
    %14 = arith.addf %11, %13 : vector<16x64xf32>
    %15 = vector.extract_strided_slice %14 {offsets = [0, 0], sizes = [16, 32], strides = [1, 1]} : vector<16x64xf32> to vector<16x32xf32>
    %16 = vector.extract_strided_slice %14 {offsets = [0, 32], sizes = [16, 32], strides = [1, 1]} : vector<16x64xf32> to vector<16x32xf32>
    %cst_11 = arith.constant 5.000000e-01 : f32
    %17 = vector.broadcast %cst_11 : f32 to vector<16x32xf32>
    %18 = arith.mulf %17, %16 : vector<16x32xf32>
    %19 = math.exp %18 : vector<16x32xf32>
    %c0_12 = arith.constant 0 : index
    %c0_13 = arith.constant 0 : index
    %20 = vector.load %arg2[%c0_12, %c0_13] : memref<16x32xf32, #tpu.memory_space<vmem>>, vector<16x32xf32>
    %21 = arith.mulf %19, %20 : vector<16x32xf32>
    %22 = arith.addf %15, %21 : vector<16x32xf32>
    %23 = arith.truncf %22 : vector<16x32xf32> to vector<16x32xbf16>
    %c0_14 = arith.constant 0 : index
    %c0_15 = arith.constant 0 : index
    %24 = vector.load %arg7[%c0_14, %c0_15] : memref<32x128xbf16, #tpu.memory_space<vmem>>, vector<32x128xbf16>
    %cst_16 = arith.constant dense<0.000000e+00> : vector<16x128xf32>
    %25 = tpu.matmul %23, %24, %cst_16 {dimension_numbers = #tpu.dot_dimension_numbers<[1], [0], [0], [1], [0, 0, 1, 1], [], []>} : vector<16x32xbf16>, vector<32x128xbf16>, vector<16x128xf32> -> vector<16x128xf32>
    %c0_17 = arith.constant 0 : index
    %c0_18 = arith.constant 0 : index
    %26 = vector.load %arg8[%c0_17, %c0_18] : memref<1x128xf32, #tpu.memory_space<vmem>>, vector<1x128xf32>
    %27 = vector.broadcast %26 : vector<1x128xf32> to vector<16x128xf32>
    %28 = arith.addf %25, %27 : vector<16x128xf32>
    %cst_19 = arith.constant 0.000000e+00 : f32
    %29 = vector.broadcast %cst_19 : f32 to vector<16x128xf32>
    %30 = arith.maximumf %28, %29 : vector<16x128xf32>
    %31 = arith.truncf %30 : vector<16x128xf32> to vector<16x128xbf16>
    %c0_20 = arith.constant 0 : index
    %c0_21 = arith.constant 0 : index
    %32 = vector.load %arg9[%c0_20, %c0_21] : memref<128x1024xbf16, #tpu.memory_space<vmem>>, vector<128x1024xbf16>
    %cst_22 = arith.constant dense<0.000000e+00> : vector<16x1024xf32>
    %33 = tpu.matmul %31, %32, %cst_22 {dimension_numbers = #tpu.dot_dimension_numbers<[1], [0], [0], [1], [0, 0, 1, 1], [], []>} : vector<16x128xbf16>, vector<128x1024xbf16>, vector<16x1024xf32> -> vector<16x1024xf32>
    %c0_23 = arith.constant 0 : index
    %c0_24 = arith.constant 0 : index
    %34 = vector.load %arg10[%c0_23, %c0_24] : memref<1x1024xf32, #tpu.memory_space<vmem>>, vector<1x1024xf32>
    %35 = vector.broadcast %34 : vector<1x1024xf32> to vector<16x1024xf32>
    %36 = arith.addf %33, %35 : vector<16x1024xf32>
    %c0_25 = arith.constant 0 : index
    %c0_26 = arith.constant 0 : index
    %37 = vector.load %arg11[%c0_25, %c0_26] : memref<16x1024xf32, #tpu.memory_space<vmem>>, vector<16x1024xf32>
    tpu.vector_store %arg11[%c0_25, %c0_26], %36 {strides = array<i32>} : memref<16x1024xf32, #tpu.memory_space<vmem>>, vector<16x1024xf32>,
    %c0_27 = arith.constant 0 : index
    %c0_28 = arith.constant 0 : index
    %38 = vector.load %arg12[%c0_27, %c0_28] : memref<16x128xf32, #tpu.memory_space<vmem>>, vector<16x64xf32>
    tpu.vector_store %arg12[%c0_27, %c0_28], %14 {strides = array<i32>} : memref<16x128xf32, #tpu.memory_space<vmem>>, vector<16x64xf32>,
    %c0_29 = arith.constant 0 : index
    %c64 = arith.constant 64 : index
    %39 = vector.load %arg12[%c0_29, %c64] : memref<16x128xf32, #tpu.memory_space<vmem>>, vector<16x32xf32>
    tpu.vector_store %arg12[%c0_29, %c64], %22 {strides = array<i32>} : memref<16x128xf32, #tpu.memory_space<vmem>>, vector<16x32xf32>,
    %c0_30 = arith.constant 0 : index
    %c96 = arith.constant 96 : index
    %40 = vector.load %arg12[%c0_30, %c96] : memref<16x128xf32, #tpu.memory_space<vmem>>, vector<16x32xf32>
    tpu.vector_store %arg12[%c0_30, %c96], %19 {strides = array<i32>} : memref<16x128xf32, #tpu.memory_space<vmem>>, vector<16x32xf32>,
    return
  }
  func.func @transform_0(%arg0: i32) -> (i32, i32) {
    %c0_i32 = arith.constant 0 : i32
    %c0_i32_0 = arith.constant 0 : i32
    return %arg0, %c0_i32 : i32, i32
  }
  func.func @transform_1(%arg0: i32) -> (i32, i32) {
    %c0_i32 = arith.constant 0 : i32
    %c0_i32_0 = arith.constant 0 : i32
    return %arg0, %c0_i32 : i32, i32
  }
  func.func @transform_2(%arg0: i32) -> (i32, i32) {
    %c0_i32 = arith.constant 0 : i32
    %c0_i32_0 = arith.constant 0 : i32
    %c0_i32_1 = arith.constant 0 : i32
    return %c0_i32, %c0_i32_0 : i32, i32
  }
  func.func @transform_3(%arg0: i32) -> (i32, i32) {
    %c0_i32 = arith.constant 0 : i32
    %c0_i32_0 = arith.constant 0 : i32
    %c0_i32_1 = arith.constant 0 : i32
    return %c0_i32, %c0_i32_0 : i32, i32
  }
  func.func @transform_4(%arg0: i32) -> (i32, i32) {
    %c0_i32 = arith.constant 0 : i32
    %c0_i32_0 = arith.constant 0 : i32
    %c0_i32_1 = arith.constant 0 : i32
    return %c0_i32, %c0_i32_0 : i32, i32
  }
  func.func @transform_5(%arg0: i32) -> (i32, i32) {
    %c0_i32 = arith.constant 0 : i32
    %c0_i32_0 = arith.constant 0 : i32
    %c0_i32_1 = arith.constant 0 : i32
    return %c0_i32, %c0_i32_0 : i32, i32
  }
  func.func @transform_6(%arg0: i32) -> (i32, i32) {
    %c0_i32 = arith.constant 0 : i32
    %c0_i32_0 = arith.constant 0 : i32
    %c0_i32_1 = arith.constant 0 : i32
    return %c0_i32, %c0_i32_0 : i32, i32
  }
  func.func @transform_7(%arg0: i32) -> (i32, i32) {
    %c0_i32 = arith.constant 0 : i32
    %c0_i32_0 = arith.constant 0 : i32
    %c0_i32_1 = arith.constant 0 : i32
    return %c0_i32, %c0_i32_0 : i32, i32
  }
  func.func @transform_8(%arg0: i32) -> (i32, i32) {
    %c0_i32 = arith.constant 0 : i32
    %c0_i32_0 = arith.constant 0 : i32
    %c0_i32_1 = arith.constant 0 : i32
    return %c0_i32, %c0_i32_0 : i32, i32
  }
  func.func @transform_9(%arg0: i32) -> (i32, i32) {
    %c0_i32 = arith.constant 0 : i32
    %c0_i32_0 = arith.constant 0 : i32
    %c0_i32_1 = arith.constant 0 : i32
    return %c0_i32, %c0_i32_0 : i32, i32
  }
  func.func @transform_10(%arg0: i32) -> (i32, i32) {
    %c0_i32 = arith.constant 0 : i32
    %c0_i32_0 = arith.constant 0 : i32
    return %arg0, %c0_i32 : i32, i32
  }
  func.func @transform_11(%arg0: i32) -> (i32, i32) {
    %c0_i32 = arith.constant 0 : i32
    %c0_i32_0 = arith.constant 0 : i32
    return %arg0, %c0_i32 : i32, i32
  }
}

</mosaic_0001>

<llo_original>
// kernel: _student_forward.1
$region0: #{_student_forward.1}
  #allocation0 [shape = 'u32[]', space=smem, size = 0x4, offset = 0x4, fixed_abs, tag = 'smem constant byte address 0x4 - core index']
  #allocation1 [shape = 'u32[144,128]{1,0:T(1,128)}', space=vmem, size = 0x12000, scoped, tag = 'internal scratch']
  %s0 = inlined_call_operand.vmem [shape: f32[16,1024], index: 0, kind: input, shape index: {}]
  %s1 = inlined_call_operand.vmem [shape: f32[16,32], index: 1, kind: input, shape index: {}]
  %s2 = inlined_call_operand.hbm [shape: bf16[1024,128], index: 2, kind: input, shape index: {}]
  %s3 = inlined_call_operand.vmem [shape: f32[1,128], index: 3, kind: input, shape index: {}]
  %s4 = inlined_call_operand.vmem [shape: bf16[128,64], index: 4, kind: input, shape index: {}]
  %s5 = inlined_call_operand.vmem [shape: f32[1,64], index: 5, kind: input, shape index: {}]
  %s6 = inlined_call_operand.vmem [shape: bf16[32,128], index: 6, kind: input, shape index: {}]
  %s7 = inlined_call_operand.vmem [shape: f32[1,128], index: 7, kind: input, shape index: {}]
  %s8 = inlined_call_operand.hbm [shape: bf16[128,1024], index: 8, kind: input, shape index: {}]
  %s9 = inlined_call_operand.vmem [shape: f32[1,1024], index: 9, kind: input, shape index: {}]
  %s10 = inlined_call_operand.vmem [shape: f32[16,1024], index: 10, kind: output, shape index: {0}]
  %s11 = inlined_call_operand.vmem [shape: f32[16,128], index: 11, kind: output, shape index: {1}]
  %12 = xla_tuple %s10, %s11
  %s13 = sld [smem:[#allocation0]]
  $region66: #{_student_forward.1} parent=0
    _
  %s15 = ssub.s32 1, %s13
  %s16 = scalar_select 0, %s15, %s13
  $region1: #{_student_forward.1} parent=0
    #allocation2 [shape = 'u8[262144]{0}', space=vmem, size = 0x40000, scoped, tag = 'input window, operand 2, single buffered']
    #allocation3 [shape = 's32[1]{0}', space=sflag, size = 0x4, scoped, tag = 'scoped memory for _student_forward.1']
    #allocation4 [shape = 'u8[262144]{0}', space=vmem, size = 0x40000, scoped, tag = 'input window, operand 8, single buffered']
    #allocation5 [shape = 's32[1]{0}', space=sflag, size = 0x4, scoped, tag = 'scoped memory for _student_forward.1']
    %17 = vsyncpa [#allocation3], 0
    %18 = vsyncpa [#allocation5], 0
    // Predicated region
    $region2: #{_student_forward.1} parent=1 // pred_check
      _
    $region3: #{_student_forward.1} parent=1 // pred_check_branch
      %20 = sbr.rel (0) target = $region5
    $region4: #{_student_forward.1} parent=1 // pred_region
      _
    $region5: #{_student_forward.1} parent=1 // pred_fallthru
      _
    // Predicated region
    $region6: #{_student_forward.1} parent=1 // pred_check
      _
    $region7: #{_student_forward.1} parent=1 // pred_check_branch
      %22 = sbr.rel (0) target = $region9
    $region8: #{_student_forward.1} parent=1 // pred_region
      _
    $region9: #{_student_forward.1} parent=1 // pred_fallthru
      _
    // Predicated region
    $region10: #{_student_forward.1} parent=1 // pred_check
      _
    $region11: #{_student_forward.1} parent=1 // pred_check_branch
      %24 = sbr.rel (0) target = $region13
    $region12: #{_student_forward.1} parent=1 // pred_region
      %s26 = ssub.s32 8192, 8192
      %27 = vsyncadd [#allocation3], %s26
      %s28 = sshll.u32 [#allocation2], 4
      %s29 = int_to_ptr.vmem [resolvable:$true] %s28
      %34 = dma.hbm_to_vmem [thread:$0]  %s2, 8192, %s29, [#allocation3], 64, 64, 4
    $region13: #{_student_forward.1} parent=1 // pred_fallthru
      _
    // Predicated region
    $region14: #{_student_forward.1} parent=1 // pred_check
      _
    $region15: #{_student_forward.1} parent=1 // pred_check_branch
      %36 = sbr.rel (0) target = $region17
    $region16: #{_student_forward.1} parent=1 // pred_region
      _
    $region17: #{_student_forward.1} parent=1 // pred_fallthru
      _
    // Predicated region
    $region18: #{_student_forward.1} parent=1 // pred_check
      _
    $region19: #{_student_forward.1} parent=1 // pred_check_branch
      %38 = sbr.rel (0) target = $region21
    $region20: #{_student_forward.1} parent=1 // pred_region
      _
    $region21: #{_student_forward.1} parent=1 // pred_fallthru
      _
    // Predicated region
    $region22: #{_student_forward.1} parent=1 // pred_check
      _
    $region23: #{_student_forward.1} parent=1 // pred_check_branch
      %40 = sbr.rel (0) target = $region25
    $region24: #{_student_forward.1} parent=1 // pred_region
      _
    $region25: #{_student_forward.1} parent=1 // pred_fallthru
      _
    // Predicated region
    $region26: #{_student_forward.1} parent=1 // pred_check
      _
    $region27: #{_student_forward.1} parent=1 // pred_check_branch
      %42 = sbr.rel (0) target = $region29
    $region28: #{_student_forward.1} parent=1 // pred_region
      _
    $region29: #{_student_forward.1} parent=1 // pred_fallthru
      _
    // Predicated region
    $region30: #{_student_forward.1} parent=1 // pred_check
      _
    $region31: #{_student_forward.1} parent=1 // pred_check_branch
      %44 = sbr.rel (0) target = $region33
    $region32: #{_student_forward.1} parent=1 // pred_region
      _
    $region33: #{_student_forward.1} parent=1 // pred_fallthru
      _
    // Predicated region
    $region34: #{_student_forward.1} parent=1 // pred_check
      _
    $region35: #{_student_forward.1} parent=1 // pred_check_branch
      %46 = sbr.rel (0) target = $region37
    $region36: #{_student_forward.1} parent=1 // pred_region
      %s48 = ssub.s32 8192, 8192
      %49 = vsyncadd [#allocation5], %s48
      %s50 = sshll.u32 [#allocation4], 4
      %s51 = int_to_ptr.vmem [resolvable:$true] %s50
      %56 = dma.hbm_to_vmem [thread:$0]  %s8, 8192, %s51, [#allocation5], 512, 512, 32
    $region37: #{_student_forward.1} parent=1 // pred_fallthru
      _
    // Predicated region
    $region38: #{_student_forward.1} parent=1 // pred_check
      _
    $region39: #{_student_forward.1} parent=1 // pred_check_branch
      %58 = sbr.rel (0) target = $region41
    $region40: #{_student_forward.1} parent=1 // pred_region
      _
    $region41: #{_student_forward.1} parent=1 // pred_fallthru
      _
    // Predicated region
    $region42: #{_student_forward.1} parent=1 // pred_check
      _
    $region43: #{_student_forward.1} parent=1 // pred_check_branch
      %60 = sbr.rel (0) target = $region45
    $region44: #{_student_forward.1} parent=1 // pred_region
      %61 = dma.done [#allocation3], 8192
    $region45: #{_student_forward.1} parent=1 // pred_fallthru
      _
    // Predicated region
    $region46: #{_student_forward.1} parent=1 // pred_check
      _
    $region47: #{_student_forward.1} parent=1 // pred_check_branch
      %63 = sbr.rel (0) target = $region49
    $region48: #{_student_forward.1} parent=1 // pred_region
      %64 = dma.done [#allocation5], 8192
    $region49: #{_student_forward.1} parent=1 // pred_fallthru
      _
    %v66 = vld [vmem:[%s0] sm:$0xff]
    %v67 = vld [vmem:[%s0 + $0x8] sm:$0xff]
    %v68 = vld [vmem:[%s0 + $0x10] sm:$0xff]
    %v69 = vld [vmem:[%s0 + $0x18] sm:$0xff]
    %v70 = vld [vmem:[%s0 + $0x20] sm:$0xff]
    %v71 = vld [vmem:[%s0 + $0x28] sm:$0xff]
    %v72 = vld [vmem:[%s0 + $0x30] sm:$0xff]
    %v73 = vld [vmem:[%s0 + $0x38] sm:$0xff]
    %v74 = vld [vmem:[%s0 + $0x40] sm:$0xff]
    %v75 = vld [vmem:[%s0 + $0x48] sm:$0xff]
    %v76 = vld [vmem:[%s0 + $0x50] sm:$0xff]
    %v77 = vld [vmem:[%s0 + $0x58] sm:$0xff]
    %v78 = vld [vmem:[%s0 + $0x60] sm:$0xff]
    %v79 = vld [vmem:[%s0 + $0x68] sm:$0xff]
    %v80 = vld [vmem:[%s0 + $0x70] sm:$0xff]
    %v81 = vld [vmem:[%s0 + $0x78] sm:$0xff]
    %v82 = vpack.c.bf16 %v74, %v66
    %v83 = vpack.c.bf16 %v75, %v67
    %v84 = vpack.c.bf16 %v76, %v68
    %v85 = vpack.c.bf16 %v77, %v69
    %v86 = vpack.c.bf16 %v78, %v70
    %v87 = vpack.c.bf16 %v79, %v71
    %v88 = vpack.c.bf16 %v80, %v72
    %v89 = vpack.c.bf16 %v81, %v73
    %v90 = vld [vmem:[#allocation2] sm:$0xf]
    %v91 = vld [vmem:[#allocation2 + $0x4] sm:$0xf]
    %v92 = vld [vmem:[#allocation2 + $0x8] sm:$0xf]
    %v93 = vld [vmem:[#allocation2 + $0xc] sm:$0xf]
    %v94 = vld [vmem:[#allocation2 + $0x10] sm:$0xf]
    %v95 = vld [vmem:[#allocation2 + $0x14] sm:$0xf]
    %v96 = vld [vmem:[#allocation2 + $0x18] sm:$0xf]
    %v97 = vld [vmem:[#allocation2 + $0x1c] sm:$0xf]
    %v98 = vld [vmem:[#allocation2 + $0x20] sm:$0xf]
    %v99 = vld [vmem:[#allocation2 + $0x24] sm:$0xf]
    %v100 = vld [vmem:[#allocation2 + $0x28] sm:$0xf]
    %v101 = vld [vmem:[#allocation2 + $0x2c] sm:$0xf]
    %v102 = vld [vmem:[#allocation2 + $0x30] sm:$0xf]
    %v103 = vld [vmem:[#allocation2 + $0x34] sm:$0xf]
    %v104 = vld [vmem:[#allocation2 + $0x38] sm:$0xf]
    %v105 = vld [vmem:[#allocation2 + $0x3c] sm:$0xf]
    %v106 = vld [vmem:[#allocation2 + $0x40] sm:$0xf]
    %v107 = vld [vmem:[#allocation2 + $0x44] sm:$0xf]
    %v108 = vld [vmem:[#allocation2 + $0x48] sm:$0xf]
    %v109 = vld [vmem:[#allocation2 + $0x4c] sm:$0xf]
    %v110 = vld [vmem:[#allocation2 + $0x50] sm:$0xf]
    %v111 = vld [vmem:[#allocation2 + $0x54] sm:$0xf]
    %v112 = vld [vmem:[#allocation2 + $0x58] sm:$0xf]
    %v113 = vld [vmem:[#allocation2 + $0x5c] sm:$0xf]
    %v114 = vld [vmem:[#allocation2 + $0x60] sm:$0xf]
    %v115 = vld [vmem:[#allocation2 + $0x64] sm:$0xf]
    %v116 = vld [vmem:[#allocation2 + $0x68] sm:$0xf]
    %v117 = vld [vmem:[#allocation2 + $0x6c] sm:$0xf]
    %v118 = vld [vmem:[#allocation2 + $0x70] sm:$0xf]
    %v119 = vld [vmem:[#allocation2 + $0x74] sm:$0xf]
    %v120 = vld [vmem:[#allocation2 + $0x78] sm:$0xf]
    %v121 = vld [vmem:[#allocation2 + $0x7c] sm:$0xf]
    %v122 = vld [vmem:[#allocation2 + $0x80] sm:$0xf]
    %v123 = vld [vmem:[#allocation2 + $0x84] sm:$0xf]
    %v124 = vld [vmem:[#allocation2 + $0x88] sm:$0xf]
    %v125 = vld [vmem:[#allocation2 + $0x8c] sm:$0xf]
    %v126 = vld [vmem:[#allocation2 + $0x90] sm:$0xf]
    %v127 = vld [vmem:[#allocation2 + $0x94] sm:$0xf]
    %v128 = vld [vmem:[#allocation2 + $0x98] sm:$0xf]
    %v129 = vld [vmem:[#allocation2 + $0x9c] sm:$0xf]
    %v130 = vld [vmem:[#allocation2 + $0xa0] sm:$0xf]
    %v131 = vld [vmem:[#allocation2 + $0xa4] sm:$0xf]
    %v132 = vld [vmem:[#allocation2 + $0xa8] sm:$0xf]
    %v133 = vld [vmem:[#allocation2 + $0xac] sm:$0xf]
    %v134 = vld [vmem:[#allocation2 + $0xb0] sm:$0xf]
    %v135 = vld [vmem:[#allocation2 + $0xb4] sm:$0xf]
    %v136 = vld [vmem:[#allocation2 + $0xb8] sm:$0xf]
    %v137 = vld [vmem:[#allocation2 + $0xbc] sm:$0xf]
    %v138 = vld [vmem:[#allocation2 + $0xc0] sm:$0xf]
    %v139 = vld [vmem:[#allocation2 + $0xc4] sm:$0xf]
    %v140 = vld [vmem:[#allocation2 + $0xc8] sm:$0xf]
    %v141 = vld [vmem:[#allocation2 + $0xcc] sm:$0xf]
    %v142 = vld [vmem:[#allocation2 + $0xd0] sm:$0xf]
    %v143 = vld [vmem:[#allocation2 + $0xd4] sm:$0xf]
    %v144 = vld [vmem:[#allocation2 + $0xd8] sm:$0xf]
    %v145 = vld [vmem:[#allocation2 + $0xdc] sm:$0xf]
    %v146 = vld [vmem:[#allocation2 + $0xe0] sm:$0xf]
    %v147 = vld [vmem:[#allocation2 + $0xe4] sm:$0xf]
    %v148 = vld [vmem:[#allocation2 + $0xe8] sm:$0xf]
    %v149 = vld [vmem:[#allocation2 + $0xec] sm:$0xf]
    %v150 = vld [vmem:[#allocation2 + $0xf0] sm:$0xf]
    %v151 = vld [vmem:[#allocation2 + $0xf4] sm:$0xf]
    %v152 = vld [vmem:[#allocation2 + $0xf8] sm:$0xf]
    %v153 = vld [vmem:[#allocation2 + $0xfc] sm:$0xf]
    %v154 = vld [vmem:[#allocation2 + $0x100] sm:$0xf]
    %v155 = vld [vmem:[#allocation2 + $0x104] sm:$0xf]
    %v156 = vld [vmem:[#allocation2 + $0x108] sm:$0xf]
    %v157 = vld [vmem:[#allocation2 + $0x10c] sm:$0xf]
    %v158 = vld [vmem:[#allocation2 + $0x110] sm:$0xf]
    %v159 = vld [vmem:[#allocation2 + $0x114] sm:$0xf]
    %v160 = vld [vmem:[#allocation2 + $0x118] sm:$0xf]
    %v161 = vld [vmem:[#allocation2 + $0x11c] sm:$0xf]
    %v162 = vld [vmem:[#allocation2 + $0x120] sm:$0xf]
    %v163 = vld [vmem:[#allocation2 + $0x124] sm:$0xf]
    %v164 = vld [vmem:[#allocation2 + $0x128] sm:$0xf]
    %v165 = vld [vmem:[#allocation2 + $0x12c] sm:$0xf]
    %v166 = vld [vmem:[#allocation2 + $0x130] sm:$0xf]
    %v167 = vld [vmem:[#allocation2 + $0x134] sm:$0xf]
    %v168 = vld [vmem:[#allocation2 + $0x138] sm:$0xf]
    %v169 = vld [vmem:[#allocation2 + $0x13c] sm:$0xf]
    %v170 = vld [vmem:[#allocation2 + $0x140] sm:$0xf]
    %v171 = vld [vmem:[#allocation2 + $0x144] sm:$0xf]
    %v172 = vld [vmem:[#allocation2 + $0x148] sm:$0xf]
    %v173 = vld [vmem:[#allocation2 + $0x14c] sm:$0xf]
    %v174 = vld [vmem:[#allocation2 + $0x150] sm:$0xf]
    %v175 = vld [vmem:[#allocation2 + $0x154] sm:$0xf]
    %v176 = vld [vmem:[#allocation2 + $0x158] sm:$0xf]
    %v177 = vld [vmem:[#allocation2 + $0x15c] sm:$0xf]
    %v178 = vld [vmem:[#allocation2 + $0x160] sm:$0xf]
    %v179 = vld [vmem:[#allocation2 + $0x164] sm:$0xf]
    %v180 = vld [vmem:[#allocation2 + $0x168] sm:$0xf]
    %v181 = vld [vmem:[#allocation2 + $0x16c] sm:$0xf]
    %v182 = vld [vmem:[#allocation2 + $0x170] sm:$0xf]
    %v183 = vld [vmem:[#allocation2 + $0x174] sm:$0xf]
    %v184 = vld [vmem:[#allocation2 + $0x178] sm:$0xf]
    %v185 = vld [vmem:[#allocation2 + $0x17c] sm:$0xf]
    %v186 = vld [vmem:[#allocation2 + $0x180] sm:$0xf]
    %v187 = vld [vmem:[#allocation2 + $0x184] sm:$0xf]
    %v188 = vld [vmem:[#allocation2 + $0x188] sm:$0xf]
    %v189 = vld [vmem:[#allocation2 + $0x18c] sm:$0xf]
    %v190 = vld [vmem:[#allocation2 + $0x190] sm:$0xf]
    %v191 = vld [vmem:[#allocation2 + $0x194] sm:$0xf]
    %v192 = vld [vmem:[#allocation2 + $0x198] sm:$0xf]
    %v193 = vld [vmem:[#allocation2 + $0x19c] sm:$0xf]
    %v194 = vld [vmem:[#allocation2 + $0x1a0] sm:$0xf]
    %v195 = vld [vmem:[#allocation2 + $0x1a4] sm:$0xf]
    %v196 = vld [vmem:[#allocation2 + $0x1a8] sm:$0xf]
    %v197 = vld [vmem:[#allocation2 + $0x1ac] sm:$0xf]
    %v198 = vld [vmem:[#allocation2 + $0x1b0] sm:$0xf]
    %v199 = vld [vmem:[#allocation2 + $0x1b4] sm:$0xf]
    %v200 = vld [vmem:[#allocation2 + $0x1b8] sm:$0xf]
    %v201 = vld [vmem:[#allocation2 + $0x1bc] sm:$0xf]
    %v202 = vld [vmem:[#allocation2 + $0x1c0] sm:$0xf]
    %v203 = vld [vmem:[#allocation2 + $0x1c4] sm:$0xf]
    %v204 = vld [vmem:[#allocation2 + $0x1c8] sm:$0xf]
    %v205 = vld [vmem:[#allocation2 + $0x1cc] sm:$0xf]
    %v206 = vld [vmem:[#allocation2 + $0x1d0] sm:$0xf]
    %v207 = vld [vmem:[#allocation2 + $0x1d4] sm:$0xf]
    %v208 = vld [vmem:[#allocation2 + $0x1d8] sm:$0xf]
    %v209 = vld [vmem:[#allocation2 + $0x1dc] sm:$0xf]
    %v210 = vld [vmem:[#allocation2 + $0x1e0] sm:$0xf]
    %v211 = vld [vmem:[#allocation2 + $0x1e4] sm:$0xf]
    %v212 = vld [vmem:[#allocation2 + $0x1e8] sm:$0xf]
    %v213 = vld [vmem:[#allocation2 + $0x1ec] sm:$0xf]
    %v214 = vld [vmem:[#allocation2 + $0x1f0] sm:$0xf]
    %v215 = vld [vmem:[#allocation2 + $0x1f4] sm:$0xf]
    %v216 = vld [vmem:[#allocation2 + $0x1f8] sm:$0xf]
    %v217 = vld [vmem:[#allocation2 + $0x1fc] sm:$0xf]
    %v218 = vld [vmem:[%s3] sm:$0x1]
    %v220 = vlaneseq
    %v221 = vshrl.u32 %v220, 7
    %v222 = vsub.s32 0, %v221
    %v223 = vrot.slane %v218, %v222
    %v353 = vunpack.c.l.b16 %v90
    %v354 = vunpack.c.l.b16 %v91
    %v355 = vunpack.c.l.b16 %v92
    %v356 = vunpack.c.l.b16 %v93
    %v357 = vunpack.c.l.b16 %v94
    %v358 = vunpack.c.l.b16 %v95
    %v359 = vunpack.c.l.b16 %v96
    %v360 = vunpack.c.l.b16 %v97
    %v361 = vunpack.c.l.b16 %v98
    %v362 = vunpack.c.l.b16 %v99
    %v363 = vunpack.c.l.b16 %v100
    %v364 = vunpack.c.l.b16 %v101
    %v365 = vunpack.c.l.b16 %v102
    %v366 = vunpack.c.l.b16 %v103
    %v367 = vunpack.c.l.b16 %v104
    %v368 = vunpack.c.l.b16 %v105
    %v369 = vunpack.c.l.b16 %v106
    %v370 = vunpack.c.l.b16 %v107
    %v371 = vunpack.c.l.b16 %v108
    %v372 = vunpack.c.l.b16 %v109
    %v373 = vunpack.c.l.b16 %v110
    %v374 = vunpack.c.l.b16 %v111
    %v375 = vunpack.c.l.b16 %v112
    %v376 = vunpack.c.l.b16 %v113
    %v377 = vunpack.c.l.b16 %v114
    %v378 = vunpack.c.l.b16 %v115
    %v379 = vunpack.c.l.b16 %v116
    %v380 = vunpack.c.l.b16 %v117
    %v381 = vunpack.c.l.b16 %v118
    %v382 = vunpack.c.l.b16 %v119
    %v383 = vunpack.c.l.b16 %v120
    %v384 = vunpack.c.l.b16 %v121
    %v385 = vunpack.c.l.b16 %v122
    %v386 = vunpack.c.l.b16 %v123
    %v387 = vunpack.c.l.b16 %v124
    %v388 = vunpack.c.l.b16 %v125
    %v389 = vunpack.c.l.b16 %v126
    %v390 = vunpack.c.l.b16 %v127
    %v391 = vunpack.c.l.b16 %v128
    %v392 = vunpack.c.l.b16 %v129
    %v393 = vunpack.c.l.b16 %v130
    %v394 = vunpack.c.l.b16 %v131
    %v395 = vunpack.c.l.b16 %v132
    %v396 = vunpack.c.l.b16 %v133
    %v397 = vunpack.c.l.b16 %v134
    %v398 = vunpack.c.l.b16 %v135
    %v399 = vunpack.c.l.b16 %v136
    %v400 = vunpack.c.l.b16 %v137
    %v401 = vunpack.c.l.b16 %v138
    %v402 = vunpack.c.l.b16 %v139
    %v403 = vunpack.c.l.b16 %v140
    %v404 = vunpack.c.l.b16 %v141
    %v405 = vunpack.c.l.b16 %v142
    %v406 = vunpack.c.l.b16 %v143
    %v407 = vunpack.c.l.b16 %v144
    %v408 = vunpack.c.l.b16 %v145
    %v409 = vunpack.c.l.b16 %v146
    %v410 = vunpack.c.l.b16 %v147
    %v411 = vunpack.c.l.b16 %v148
    %v412 = vunpack.c.l.b16 %v149
    %v413 = vunpack.c.l.b16 %v150
    %v414 = vunpack.c.l.b16 %v151
    %v415 = vunpack.c.l.b16 %v152
    %v416 = vunpack.c.l.b16 %v153
    %v417 = vunpack.c.l.b16 %v154
    %v418 = vunpack.c.l.b16 %v155
    %v419 = vunpack.c.l.b16 %v156
    %v420 = vunpack.c.l.b16 %v157
    %v421 = vunpack.c.l.b16 %v158
    %v422 = vunpack.c.l.b16 %v159
    %v423 = vunpack.c.l.b16 %v160
    %v424 = vunpack.c.l.b16 %v161
    %v425 = vunpack.c.l.b16 %v162
    %v426 = vunpack.c.l.b16 %v163
    %v427 = vunpack.c.l.b16 %v164
    %v428 = vunpack.c.l.b16 %v165
    %v429 = vunpack.c.l.b16 %v166
    %v430 = vunpack.c.l.b16 %v167
    %v431 = vunpack.c.l.b16 %v168
    %v432 = vunpack.c.l.b16 %v169
    %v433 = vunpack.c.l.b16 %v170
    %v434 = vunpack.c.l.b16 %v171
    %v435 = vunpack.c.l.b16 %v172
    %v436 = vunpack.c.l.b16 %v173
    %v437 = vunpack.c.l.b16 %v174
    %v438 = vunpack.c.l.b16 %v175
    %v439 = vunpack.c.l.b16 %v176
    %v440 = vunpack.c.l.b16 %v177
    %v441 = vunpack.c.l.b16 %v178
    %v442 = vunpack.c.l.b16 %v179
    %v443 = vunpack.c.l.b16 %v180
    %v444 = vunpack.c.l.b16 %v181
    %v445 = vunpack.c.l.b16 %v182
    %v446 = vunpack.c.l.b16 %v183
    %v447 = vunpack.c.l.b16 %v184
    %v448 = vunpack.c.l.b16 %v185
    %v449 = vunpack.c.l.b16 %v186
    %v450 = vunpack.c.l.b16 %v187
    %v451 = vunpack.c.l.b16 %v188
    %v452 = vunpack.c.l.b16 %v189
    %v453 = vunpack.c.l.b16 %v190
    %v454 = vunpack.c.l.b16 %v191
    %v455 = vunpack.c.l.b16 %v192
    %v456 = vunpack.c.l.b16 %v193
    %v457 = vunpack.c.l.b16 %v194
    %v458 = vunpack.c.l.b16 %v195
    %v459 = vunpack.c.l.b16 %v196
    %v460 = vunpack.c.l.b16 %v197
    %v461 = vunpack.c.l.b16 %v198
    %v462 = vunpack.c.l.b16 %v199
    %v463 = vunpack.c.l.b16 %v200
    %v464 = vunpack.c.l.b16 %v201
    %v465 = vunpack.c.l.b16 %v202
    %v466 = vunpack.c.l.b16 %v203
    %v467 = vunpack.c.l.b16 %v204
    %v468 = vunpack.c.l.b16 %v205
    %v469 = vunpack.c.l.b16 %v206
    %v470 = vunpack.c.l.b16 %v207
    %v471 = vunpack.c.l.b16 %v208
    %v472 = vunpack.c.l.b16 %v209
    %v473 = vunpack.c.l.b16 %v210
    %v474 = vunpack.c.l.b16 %v211
    %v475 = vunpack.c.l.b16 %v212
    %v476 = vunpack.c.l.b16 %v213
    %v477 = vunpack.c.l.b16 %v214
    %v478 = vunpack.c.l.b16 %v215
    %v479 = vunpack.c.l.b16 %v216
    %v480 = vunpack.c.l.b16 %v217
    %v481 = vpack.c.b16 %v354, %v353
    %v482 = vpack.c.b16 %v356, %v355
    %v483 = vpack.c.b16 %v358, %v357
    %v484 = vpack.c.b16 %v360, %v359
    %v485 = vpack.c.b16 %v362, %v361
    %v486 = vpack.c.b16 %v364, %v363
    %v487 = vpack.c.b16 %v366, %v365
    %v488 = vpack.c.b16 %v368, %v367
    %v489 = vpack.c.b16 %v370, %v369
    %v490 = vpack.c.b16 %v372, %v371
    %v491 = vpack.c.b16 %v374, %v373
    %v492 = vpack.c.b16 %v376, %v375
    %v493 = vpack.c.b16 %v378, %v377
    %v494 = vpack.c.b16 %v380, %v379
    %v495 = vpack.c.b16 %v382, %v381
    %v496 = vpack.c.b16 %v384, %v383
    %v497 = vpack.c.b16 %v386, %v385
    %v498 = vpack.c.b16 %v388, %v387
    %v499 = vpack.c.b16 %v390, %v389
    %v500 = vpack.c.b16 %v392, %v391
    %v501 = vpack.c.b16 %v394, %v393
    %v502 = vpack.c.b16 %v396, %v395
    %v503 = vpack.c.b16 %v398, %v397
    %v504 = vpack.c.b16 %v400, %v399
    %v505 = vpack.c.b16 %v402, %v401
    %v506 = vpack.c.b16 %v404, %v403
    %v507 = vpack.c.b16 %v406, %v405
    %v508 = vpack.c.b16 %v408, %v407
    %v509 = vpack.c.b16 %v410, %v409
    %v510 = vpack.c.b16 %v412, %v411
    %v511 = vpack.c.b16 %v414, %v413
    %v512 = vpack.c.b16 %v416, %v415
    %v513 = vpack.c.b16 %v418, %v417
    %v514 = vpack.c.b16 %v420, %v419
    %v515 = vpack.c.b16 %v422, %v421
    %v516 = vpack.c.b16 %v424, %v423
    %v517 = vpack.c.b16 %v426, %v425
    %v518 = vpack.c.b16 %v428, %v427
    %v519 = vpack.c.b16 %v430, %v429
    %v520 = vpack.c.b16 %v432, %v431
    %v521 = vpack.c.b16 %v434, %v433
    %v522 = vpack.c.b16 %v436, %v435
    %v523 = vpack.c.b16 %v438, %v437
    %v524 = vpack.c.b16 %v440, %v439
    %v525 = vpack.c.b16 %v442, %v441
    %v526 = vpack.c.b16 %v444, %v443
    %v527 = vpack.c.b16 %v446, %v445
    %v528 = vpack.c.b16 %v448, %v447
    %v529 = vpack.c.b16 %v450, %v449
    %v530 = vpack.c.b16 %v452, %v451
    %v531 = vpack.c.b16 %v454, %v453
    %v532 = vpack.c.b16 %v456, %v455
    %v533 = vpack.c.b16 %v458, %v457
    %v534 = vpack.c.b16 %v460, %v459
    %v535 = vpack.c.b16 %v462, %v461
    %v536 = vpack.c.b16 %v464, %v463
    %v537 = vpack.c.b16 %v466, %v465
    %v538 = vpack.c.b16 %v468, %v467
    %v539 = vpack.c.b16 %v470, %v469
    %v540 = vpack.c.b16 %v472, %v471
    %v541 = vpack.c.b16 %v474, %v473
    %v542 = vpack.c.b16 %v476, %v475
    %v543 = vpack.c.b16 %v478, %v477
    %v544 = vpack.c.b16 %v480, %v479
    %609 = vmatprep.subr.bf16.mxu0 0
    %610 = vmatpush1.bf16.msra.mxu0 %v481
    %611 = vmatprep.subr.bf16.mxu0 0
    %612 = vmatpush1.bf16.msra.mxu0 %v482
    %613 = vmatprep.subr.bf16.mxu0 0
    %614 = vmatpush1.bf16.msra.mxu0 %v483
    %615 = vmatprep.subr.bf16.mxu0 0
    %616 = vmatpush1.bf16.msra.mxu0 %v484
    %617 = vmatprep.subr.bf16.mxu0 0
    %618 = vmatpush1.bf16.msra.mxu0 %v485
    %619 = vmatprep.subr.bf16.mxu0 0
    %620 = vmatpush1.bf16.msra.mxu0 %v486
    %621 = vmatprep.subr.bf16.mxu0 0
    %622 = vmatpush1.bf16.msra.mxu0 %v487
    %623 = vmatprep.subr.bf16.mxu0 0
    %624 = vmatpush1.bf16.msra.mxu0 %v488
    %625 = vmatprep.subr.bf16.mxu0 0
    %626 = vmatpush1.bf16.msra.mxu0 %v489
    %627 = vmatprep.subr.bf16.mxu0 0
    %628 = vmatpush1.bf16.msra.mxu0 %v490
    %629 = vmatprep.subr.bf16.mxu0 0
    %630 = vmatpush1.bf16.msra.mxu0 %v491
    %631 = vmatprep.subr.bf16.mxu0 0
    %632 = vmatpush1.bf16.msra.mxu0 %v492
    %633 = vmatprep.subr.bf16.mxu0 0
    %634 = vmatpush1.bf16.msra.mxu0 %v493
    %635 = vmatprep.subr.bf16.mxu0 0
    %636 = vmatpush1.bf16.msra.mxu0 %v494
    %637 = vmatprep.subr.bf16.mxu0 0
    %638 = vmatpush1.bf16.msra.mxu0 %v495
    %639 = vmatprep.subr.bf16.mxu0 0
    %640 = vmatpush1.bf16.msra.mxu0 %v496
    %641 = vmatprep.mubr.bf16.mxu0 %v83
    %642 = vmatmul.mubr.bf16.gmra.mrb[0].mxu0 %v82
    %v643 = vpop.f32.mrb[0].mxu0
    %v644 = vadd.f32 %v223, %v643
    %v645 = vpop.f32.mrb[0].mxu0
    %v646 = vpop.f32.mrb[0].mxu0
    %v647 = vadd.f32 %v223, %v646
    %v648 = vpop.f32.mrb[0].mxu0
    %649 = vdwg.mxu0
    %650 = vmatprep.subr.bf16.mxu0 0
    %651 = vmatpush1.bf16.msra.mxu0 %v497
    %652 = vmatprep.subr.bf16.mxu0 0
    %653 = vmatpush1.bf16.msra.mxu0 %v498
    %654 = vmatprep.subr.bf16.mxu0 0
    %655 = vmatpush1.bf16.msra.mxu0 %v499
    %656 = vmatprep.subr.bf16.mxu0 0
    %657 = vmatpush1.bf16.msra.mxu0 %v500
    %658 = vmatprep.subr.bf16.mxu0 0
    %659 = vmatpush1.bf16.msra.mxu0 %v501
    %660 = vmatprep.subr.bf16.mxu0 0
    %661 = vmatpush1.bf16.msra.mxu0 %v502
    %662 = vmatprep.subr.bf16.mxu0 0
    %663 = vmatpush1.bf16.msra.mxu0 %v503
    %664 = vmatprep.subr.bf16.mxu0 0
    %665 = vmatpush1.bf16.msra.mxu0 %v504
    %666 = vmatprep.subr.bf16.mxu0 0
    %667 = vmatpush1.bf16.msra.mxu0 %v505
    %668 = vmatprep.subr.bf16.mxu0 0
    %669 = vmatpush1.bf16.msra.mxu0 %v506
    %670 = vmatprep.subr.bf16.mxu0 0
    %671 = vmatpush1.bf16.msra.mxu0 %v507
    %672 = vmatprep.subr.bf16.mxu0 0
    %673 = vmatpush1.bf16.msra.mxu0 %v508
    %674 = vmatprep.subr.bf16.mxu0 0
    %675 = vmatpush1.bf16.msra.mxu0 %v509
    %676 = vmatprep.subr.bf16.mxu0 0
    %677 = vmatpush1.bf16.msra.mxu0 %v510
    %678 = vmatprep.subr.bf16.mxu0 0
    %679 = vmatpush1.bf16.msra.mxu0 %v511
    %680 = vmatprep.subr.bf16.mxu0 0
    %681 = vmatpush1.bf16.msra.mxu0 %v512
    %682 = vmatprep.mubr.bf16.mxu0 %v85
    %683 = vmatmul.mubr.bf16.gmra.mrb[0].mxu0 %v84
    %v684 = vpop.f32.mrb[0].mxu0
    %v685 = vadd.f32 %v644, %v684
    %v686 = vpop.f32.mrb[0].mxu0
    %v687 = vpop.f32.mrb[0].mxu0
    %v688 = vadd.f32 %v647, %v687
    %v689 = vpop.f32.mrb[0].mxu0
    %690 = vdwg.mxu0
    %691 = vmatprep.subr.bf16.mxu0 0
    %692 = vmatpush1.bf16.msra.mxu0 %v513
    %693 = vmatprep.subr.bf16.mxu0 0
    %694 = vmatpush1.bf16.msra.mxu0 %v514
    %695 = vmatprep.subr.bf16.mxu0 0
    %696 = vmatpush1.bf16.msra.mxu0 %v515
    %697 = vmatprep.subr.bf16.mxu0 0
    %698 = vmatpush1.bf16.msra.mxu0 %v516
    %699 = vmatprep.subr.bf16.mxu0 0
    %700 = vmatpush1.bf16.msra.mxu0 %v517
    %701 = vmatprep.subr.bf16.mxu0 0
    %702 = vmatpush1.bf16.msra.mxu0 %v518
    %703 = vmatprep.subr.bf16.mxu0 0
    %704 = vmatpush1.bf16.msra.mxu0 %v519
    %705 = vmatprep.subr.bf16.mxu0 0
    %706 = vmatpush1.bf16.msra.mxu0 %v520
    %707 = vmatprep.subr.bf16.mxu0 0
    %708 = vmatpush1.bf16.msra.mxu0 %v521
    %709 = vmatprep.subr.bf16.mxu0 0
    %710 = vmatpush1.bf16.msra.mxu0 %v522
    %711 = vmatprep.subr.bf16.mxu0 0
    %712 = vmatpush1.bf16.msra.mxu0 %v523
    %713 = vmatprep.subr.bf16.mxu0 0
    %714 = vmatpush1.bf16.msra.mxu0 %v524
    %715 = vmatprep.subr.bf16.mxu0 0
    %716 = vmatpush1.bf16.msra.mxu0 %v525
    %717 = vmatprep.subr.bf16.mxu0 0
    %718 = vmatpush1.bf16.msra.mxu0 %v526
    %719 = vmatprep.subr.bf16.mxu0 0
    %720 = vmatpush1.bf16.msra.mxu0 %v527
    %721 = vmatprep.subr.bf16.mxu0 0
    %722 = vmatpush1.bf16.msra.mxu0 %v528
    %723 = vmatprep.mubr.bf16.mxu0 %v87
    %724 = vmatmul.mubr.bf16.gmra.mrb[0].mxu0 %v86
    %v725 = vpop.f32.mrb[0].mxu0
    %v726 = vadd.f32 %v685, %v725
    %v727 = vpop.f32.mrb[0].mxu0
    %v728 = vpop.f32.mrb[0].mxu0
    %v729 = vadd.f32 %v688, %v728
    %v730 = vpop.f32.mrb[0].mxu0
    %731 = vdwg.mxu0
    %732 = vmatprep.subr.bf16.mxu0 0
    %733 = vmatpush1.bf16.msra.mxu0 %v529
    %734 = vmatprep.subr.bf16.mxu0 0
    %735 = vmatpush1.bf16.msra.mxu0 %v530
    %736 = vmatprep.subr.bf16.mxu0 0
    %737 = vmatpush1.bf16.msra.mxu0 %v531
    %738 = vmatprep.subr.bf16.mxu0 0
    %739 = vmatpush1.bf16.msra.mxu0 %v532
    %740 = vmatprep.subr.bf16.mxu0 0
    %741 = vmatpush1.bf16.msra.mxu0 %v533
    %742 = vmatprep.subr.bf16.mxu0 0
    %743 = vmatpush1.bf16.msra.mxu0 %v534
    %744 = vmatprep.subr.bf16.mxu0 0
    %745 = vmatpush1.bf16.msra.mxu0 %v535
    %746 = vmatprep.subr.bf16.mxu0 0
    %747 = vmatpush1.bf16.msra.mxu0 %v536
    %748 = vmatprep.subr.bf16.mxu0 0
    %749 = vmatpush1.bf16.msra.mxu0 %v537
    %750 = vmatprep.subr.bf16.mxu0 0
    %751 = vmatpush1.bf16.msra.mxu0 %v538
    %752 = vmatprep.subr.bf16.mxu0 0
    %753 = vmatpush1.bf16.msra.mxu0 %v539
    %754 = vmatprep.subr.bf16.mxu0 0
    %755 = vmatpush1.bf16.msra.mxu0 %v540
    %756 = vmatprep.subr.bf16.mxu0 0
    %757 = vmatpush1.bf16.msra.mxu0 %v541
    %758 = vmatprep.subr.bf16.mxu0 0
    %759 = vmatpush1.bf16.msra.mxu0 %v542
    %760 = vmatprep.subr.bf16.mxu0 0
    %761 = vmatpush1.bf16.msra.mxu0 %v543
    %762 = vmatprep.subr.bf16.mxu0 0
    %763 = vmatpush1.bf16.msra.mxu0 %v544
    %764 = vmatprep.mubr.bf16.mxu0 %v89
    %765 = vmatmul.mubr.bf16.gmra.mrb[0].mxu0 %v88
    %v766 = vpop.f32.mrb[0].mxu0
    %v767 = vadd.f32 %v726, %v766
    %v768 = vpop.f32.mrb[0].mxu0
    %v769 = vpop.f32.mrb[0].mxu0
    %v770 = vadd.f32 %v729, %v769
    %v771 = vpop.f32.mrb[0].mxu0
    %772 = vdwg.mxu0
    %v773 = vmax.f32 %v767, 0.0
    %v774 = vmax.f32 %v770, 0.0
    %v775 = vpack.c.bf16 %v774, %v773
    %v776 = vld [vmem:[%s4] sm:$0xf]
    %v777 = vld [vmem:[%s4 + $0x4] sm:$0xf]
    %v778 = vld [vmem:[%s4 + $0x8] sm:$0xf]
    %v779 = vld [vmem:[%s4 + $0xc] sm:$0xf]
    %v780 = vld [vmem:[%s4 + $0x10] sm:$0xf]
    %v781 = vld [vmem:[%s4 + $0x14] sm:$0xf]
    %v782 = vld [vmem:[%s4 + $0x18] sm:$0xf]
    %v783 = vld [vmem:[%s4 + $0x1c] sm:$0xf]
    %v784 = vld [vmem:[%s4 + $0x20] sm:$0xf]
    %v785 = vld [vmem:[%s4 + $0x24] sm:$0xf]
    %v786 = vld [vmem:[%s4 + $0x28] sm:$0xf]
    %v787 = vld [vmem:[%s4 + $0x2c] sm:$0xf]
    %v788 = vld [vmem:[%s4 + $0x30] sm:$0xf]
    %v789 = vld [vmem:[%s4 + $0x34] sm:$0xf]
    %v790 = vld [vmem:[%s4 + $0x38] sm:$0xf]
    %v791 = vld [vmem:[%s4 + $0x3c] sm:$0xf]
    %v792 = vld [vmem:[%s5] sm:$0x1]
    %v794 = vlaneseq
    %v795 = vshrl.u32 %v794, 7
    %v796 = vsub.s32 0, %v795
    %v797 = vrot.slane %v792, %v796
    %v815 = vunpack.c.l.b16 %v776
    %v816 = vunpack.c.l.b16 %v777
    %v817 = vunpack.c.l.b16 %v778
    %v818 = vunpack.c.l.b16 %v779
    %v819 = vunpack.c.l.b16 %v780
    %v820 = vunpack.c.l.b16 %v781
    %v821 = vunpack.c.l.b16 %v782
    %v822 = vunpack.c.l.b16 %v783
    %v823 = vunpack.c.l.b16 %v784
    %v824 = vunpack.c.l.b16 %v785
    %v825 = vunpack.c.l.b16 %v786
    %v826 = vunpack.c.l.b16 %v787
    %v827 = vunpack.c.l.b16 %v788
    %v828 = vunpack.c.l.b16 %v789
    %v829 = vunpack.c.l.b16 %v790
    %v830 = vunpack.c.l.b16 %v791
    %v831 = vpack.c.b16 %v816, %v815
    %v832 = vpack.c.b16 %v818, %v817
    %v833 = vpack.c.b16 %v820, %v819
    %v834 = vpack.c.b16 %v822, %v821
    %v835 = vpack.c.b16 %v824, %v823
    %v836 = vpack.c.b16 %v826, %v825
    %v837 = vpack.c.b16 %v828, %v827
    %v838 = vpack.c.b16 %v830, %v829
    %847 = vmatprep.subr.bf16.mxu0 0
    %848 = vmatpush1.bf16.msra.mxu0 %v831
    %849 = vmatprep.subr.bf16.mxu0 0
    %850 = vmatpush1.bf16.msra.mxu0 %v832
    %851 = vmatprep.subr.bf16.mxu0 0
    %852 = vmatpush1.bf16.msra.mxu0 %v833
    %853 = vmatprep.subr.bf16.mxu0 0
    %854 = vmatpush1.bf16.msra.mxu0 %v834
    %855 = vmatprep.subr.bf16.mxu0 0
    %856 = vmatpush1.bf16.msra.mxu0 %v835
    %857 = vmatprep.subr.bf16.mxu0 0
    %858 = vmatpush1.bf16.msra.mxu0 %v836
    %859 = vmatprep.subr.bf16.mxu0 0
    %860 = vmatpush1.bf16.msra.mxu0 %v837
    %861 = vmatprep.subr.bf16.mxu0 0
    %862 = vmatpush1.bf16.msra.mxu0 %v838
    %863 = vmatprep.subr.bf16.mxu0 0
    %864 = vmatpush1.bf16.msra.mxu0 0
    %865 = vmatprep.subr.bf16.mxu0 0
    %866 = vmatpush1.bf16.msra.mxu0 0
    %867 = vmatprep.subr.bf16.mxu0 0
    %868 = vmatpush1.bf16.msra.mxu0 0
    %869 = vmatprep.subr.bf16.mxu0 0
    %870 = vmatpush1.bf16.msra.mxu0 0
    %871 = vmatprep.subr.bf16.mxu0 0
    %872 = vmatpush1.bf16.msra.mxu0 0
    %873 = vmatprep.subr.bf16.mxu0 0
    %874 = vmatpush1.bf16.msra.mxu0 0
    %875 = vmatprep.subr.bf16.mxu0 0
    %876 = vmatpush1.bf16.msra.mxu0 0
    %877 = vmatprep.subr.bf16.mxu0 0
    %878 = vmatpush1.bf16.msra.mxu0 0
    %879 = vmatprep.mubr.bf16.mxu0 0
    %880 = vmatmul.mubr.bf16.gmra.mrb[0].mxu0 %v775
    %v881 = vpop.f32.mrb[0].mxu0
    %v882 = vadd.f32 %v797, %v881
    %v883 = vpop.f32.mrb[0].mxu0
    %v884 = vpop.f32.mrb[0].mxu0
    %v885 = vadd.f32 %v797, %v884
    %v886 = vpop.f32.mrb[0].mxu0
    %887 = vdwg.mxu0
    %v888 = vmul.f32 %v882, 0.5
    %v889 = vmul.f32 %v885, 0.5
    %v890 = vmul.f32 %v888, 1.442695
    %v891 = vpow.pop %v890
    %v892 = vmul.f32 %v889, 1.442695
    %v893 = vpow.pop %v892
    %v894 = vld [vmem:[%s1] sm:$0xff]
    %v895 = vld [vmem:[%s1 + $0x8] sm:$0xff]
    %898 = vrot.lane.b32.xlu0 %v894, 32
    %v899 = vpop.permute.xlu0 %898
    %900 = vrot.lane.b32.xlu0 %v895, 32
    %v901 = vpop.permute.xlu0 %900
    %v904 = vmul.f32 %v891, %v899
    %v905 = vmul.f32 %v893, %v901
    %908 = vrot.lane.b32.xlu0 %v904, 96
    %v909 = vpop.permute.xlu0 %908
    %910 = vrot.lane.b32.xlu0 %v905, 96
    %v911 = vpop.permute.xlu0 %910
    %v914 = vadd.f32 %v882, %v909
    %v915 = vadd.f32 %v885, %v911
    %v916 = vpack.c.bf16 %v915, %v914
    %v917 = vld [vmem:[%s6] sm:$0xf]
    %v918 = vld [vmem:[%s6 + $0x4] sm:$0xf]
    %v919 = vld [vmem:[%s6 + $0x8] sm:$0xf]
    %v920 = vld [vmem:[%s6 + $0xc] sm:$0xf]
    %v921 = vld [vmem:[%s7] sm:$0x1]
    %v923 = vlaneseq
    %v924 = vshrl.u32 %v923, 7
    %v925 = vsub.s32 0, %v924
    %v926 = vrot.slane %v921, %v925
    %v932 = vunpack.c.l.b16 %v917
    %v933 = vunpack.c.l.b16 %v918
    %v934 = vunpack.c.l.b16 %v919
    %v935 = vunpack.c.l.b16 %v920
    %v936 = vpack.c.b16 %v933, %v932
    %v937 = vpack.c.b16 %v935, %v934
    %vm940 = vcmask 261120
    %v942 = vsel %vm940, %v916, 0
    %944 = vmatprep.subr.bf16.mxu0 0
    %945 = vmatpush1.bf16.msra.mxu0 %v936
    %946 = vmatprep.subr.bf16.mxu0 0
    %947 = vmatpush1.bf16.msra.mxu0 %v937
    %948 = vmatprep.subr.bf16.mxu0 0
    %949 = vmatpush1.bf16.msra.mxu0 0
    %950 = vmatprep.subr.bf16.mxu0 0
    %951 = vmatpush1.bf16.msra.mxu0 0
    %952 = vmatprep.subr.bf16.mxu0 0
    %953 = vmatpush1.bf16.msra.mxu0 0
    %954 = vmatprep.subr.bf16.mxu0 0
    %955 = vmatpush1.bf16.msra.mxu0 0
    %956 = vmatprep.subr.bf16.mxu0 0
    %957 = vmatpush1.bf16.msra.mxu0 0
    %958 = vmatprep.subr.bf16.mxu0 0
    %959 = vmatpush1.bf16.msra.mxu0 0
    %960 = vmatprep.subr.bf16.mxu0 0
    %961 = vmatpush1.bf16.msra.mxu0 0
    %962 = vmatprep.subr.bf16.mxu0 0
    %963 = vmatpush1.bf16.msra.mxu0 0
    %964 = vmatprep.subr.bf16.mxu0 0
    %965 = vmatpush1.bf16.msra.mxu0 0
    %966 = vmatprep.subr.bf16.mxu0 0
    %967 = vmatpush1.bf16.msra.mxu0 0
    %968 = vmatprep.subr.bf16.mxu0 0
    %969 = vmatpush1.bf16.msra.mxu0 0
    %970 = vmatprep.subr.bf16.mxu0 0
    %971 = vmatpush1.bf16.msra.mxu0 0
    %972 = vmatprep.subr.bf16.mxu0 0
    %973 = vmatpush1.bf16.msra.mxu0 0
    %974 = vmatprep.subr.bf16.mxu0 0
    %975 = vmatpush1.bf16.msra.mxu0 0
    %976 = vmatprep.mubr.bf16.mxu0 0
    %977 = vmatmul.mubr.bf16.gmra.mrb[0].mxu0 %v942
    %v978 = vpop.f32.mrb[0].mxu0
    %v979 = vadd.f32 %v926, %v978
    %v980 = vpop.f32.mrb[0].mxu0
    %v981 = vpop.f32.mrb[0].mxu0
    %v982 = vadd.f32 %v926, %v981
    %v983 = vpop.f32.mrb[0].mxu0
    %984 = vdwg.mxu0
    %v985 = vmax.f32 %v979, 0.0
    %v986 = vmax.f32 %v982, 0.0
    %v987 = vpack.c.bf16 %v986, %v985
    %v988 = vld [vmem:[#allocation4] sm:$0xff]
    %v989 = vld [vmem:[#allocation4 + $0x8] sm:$0xff]
    %v990 = vld [vmem:[#allocation4 + $0x10] sm:$0xff]
    %v991 = vld [vmem:[#allocation4 + $0x18] sm:$0xff]
    %v992 = vld [vmem:[#allocation4 + $0x20] sm:$0xff]
    %v993 = vld [vmem:[#allocation4 + $0x28] sm:$0xff]
    %v994 = vld [vmem:[#allocation4 + $0x30] sm:$0xff]
    %v995 = vld [vmem:[#allocation4 + $0x38] sm:$0xff]
    %v996 = vld [vmem:[#allocation4 + $0x40] sm:$0xff]
    %v997 = vld [vmem:[#allocation4 + $0x48] sm:$0xff]
    %v998 = vld [vmem:[#allocation4 + $0x50] sm:$0xff]
    %v999 = vld [vmem:[#allocation4 + $0x58] sm:$0xff]
    %v1000 = vld [vmem:[#allocation4 + $0x60] sm:$0xff]
    %v1001 = vld [vmem:[#allocation4 + $0x68] sm:$0xff]
    %v1002 = vld [vmem:[#allocation4 + $0x70] sm:$0xff]
    %v1003 = vld [vmem:[#allocation4 + $0x78] sm:$0xff]
    %v1004 = vld [vmem:[#allocation4 + $0x80] sm:$0xff]
    %v1005 = vld [vmem:[#allocation4 + $0x88] sm:$0xff]
    %v1006 = vld [vmem:[#allocation4 + $0x90] sm:$0xff]
    %v1007 = vld [vmem:[#allocation4 + $0x98] sm:$0xff]
    %v1008 = vld [vmem:[#allocation4 + $0xa0] sm:$0xff]
    %v1009 = vld [vmem:[#allocation4 + $0xa8] sm:$0xff]
    %v1010 = vld [vmem:[#allocation4 + $0xb0] sm:$0xff]
    %v1011 = vld [vmem:[#allocation4 + $0xb8] sm:$0xff]
    %v1012 = vld [vmem:[#allocation4 + $0xc0] sm:$0xff]
    %v1013 = vld [vmem:[#allocation4 + $0xc8] sm:$0xff]
    %v1014 = vld [vmem:[#allocation4 + $0xd0] sm:$0xff]
    %v1015 = vld [vmem:[#allocation4 + $0xd8] sm:$0xff]
    %v1016 = vld [vmem:[#allocation4 + $0xe0] sm:$0xff]
    %v1017 = vld [vmem:[#allocation4 + $0xe8] sm:$0xff]
    %v1018 = vld [vmem:[#allocation4 + $0xf0] sm:$0xff]
    %v1019 = vld [vmem:[#allocation4 + $0xf8] sm:$0xff]
    %v1020 = vld [vmem:[#allocation4 + $0x100] sm:$0xff]
    %v1021 = vld [vmem:[#allocation4 + $0x108] sm:$0xff]
    %v1022 = vld [vmem:[#allocation4 + $0x110] sm:$0xff]
    %v1023 = vld [vmem:[#allocation4 + $0x118] sm:$0xff]
    %v1024 = vld [vmem:[#allocation4 + $0x120] sm:$0xff]
    %v1025 = vld [vmem:[#allocation4 + $0x128] sm:$0xff]
    %v1026 = vld [vmem:[#allocation4 + $0x130] sm:$0xff]
    %v1027 = vld [vmem:[#allocation4 + $0x138] sm:$0xff]
    %v1028 = vld [vmem:[#allocation4 + $0x140] sm:$0xff]
    %v1029 = vld [vmem:[#allocation4 + $0x148] sm:$0xff]
    %v1030 = vld [vmem:[#allocation4 + $0x150] sm:$0xff]
    %v1031 = vld [vmem:[#allocation4 + $0x158] sm:$0xff]
    %v1032 = vld [vmem:[#allocation4 + $0x160] sm:$0xff]
    %v1033 = vld [vmem:[#allocation4 + $0x168] sm:$0xff]
    %v1034 = vld [vmem:[#allocation4 + $0x170] sm:$0xff]
    %v1035 = vld [vmem:[#allocation4 + $0x178] sm:$0xff]
    %v1036 = vld [vmem:[#allocation4 + $0x180] sm:$0xff]
    %v1037 = vld [vmem:[#allocation4 + $0x188] sm:$0xff]
    %v1038 = vld [vmem:[#allocation4 + $0x190] sm:$0xff]
    %v1039 = vld [vmem:[#allocation4 + $0x198] sm:$0xff]
    %v1040 = vld [vmem:[#allocation4 + $0x1a0] sm:$0xff]
    %v1041 = vld [vmem:[#allocation4 + $0x1a8] sm:$0xff]
    %v1042 = vld [vmem:[#allocation4 + $0x1b0] sm:$0xff]
    %v1043 = vld [vmem:[#allocation4 + $0x1b8] sm:$0xff]
    %v1044 = vld [vmem:[#allocation4 + $0x1c0] sm:$0xff]
    %v1045 = vld [vmem:[#allocation4 + $0x1c8] sm:$0xff]
    %v1046 = vld [vmem:[#allocation4 + $0x1d0] sm:$0xff]
    %v1047 = vld [vmem:[#allocation4 + $0x1d8] sm:$0xff]
    %v1048 = vld [vmem:[#allocation4 + $0x1e0] sm:$0xff]
    %v1049 = vld [vmem:[#allocation4 + $0x1e8] sm:$0xff]
    %v1050 = vld [vmem:[#allocation4 + $0x1f0] sm:$0xff]
    %v1051 = vld [vmem:[#allocation4 + $0x1f8] sm:$0xff]
    %v1052 = vld [vmem:[%s9] sm:$0xff]
    %v1054 = vlaneseq
    %v1055 = vshrl.u32 %v1054, 7
    %v1056 = vsub.s32 0, %v1055
    %v1057 = vrot.slane %v1052, %v1056
    %v1058 = vlaneseq
    %v1059 = vshrl.u32 %v1058, 7
    %v1060 = vsub.s32 1, %v1059
    %v1061 = vrot.slane %v1052, %v1060
    %v1062 = vlaneseq
    %v1063 = vshrl.u32 %v1062, 7
    %v1064 = vsub.s32 2, %v1063
    %v1065 = vrot.slane %v1052, %v1064
    %v1066 = vlaneseq
    %v1067 = vshrl.u32 %v1066, 7
    %v1068 = vsub.s32 3, %v1067
    %v1069 = vrot.slane %v1052, %v1068
    %v1070 = vlaneseq
    %v1071 = vshrl.u32 %v1070, 7
    %v1072 = vsub.s32 4, %v1071
    %v1073 = vrot.slane %v1052, %v1072
    %v1074 = vlaneseq
    %v1075 = vshrl.u32 %v1074, 7
    %v1076 = vsub.s32 5, %v1075
    %v1077 = vrot.slane %v1052, %v1076
    %v1078 = vlaneseq
    %v1079 = vshrl.u32 %v1078, 7
    %v1080 = vsub.s32 6, %v1079
    %v1081 = vrot.slane %v1052, %v1080
    %v1082 = vlaneseq
    %v1083 = vshrl.u32 %v1082, 7
    %v1084 = vsub.s32 7, %v1083
    %v1085 = vrot.slane %v1052, %v1084
    %v1158 = vunpack.c.l.b16 %v988
    %v1159 = vunpack.c.h.b16 %v988
    %v1160 = vunpack.c.l.b16 %v989
    %v1161 = vunpack.c.h.b16 %v989
    %v1162 = vunpack.c.l.b16 %v990
    %v1163 = vunpack.c.h.b16 %v990
    %v1164 = vunpack.c.l.b16 %v991
    %v1165 = vunpack.c.h.b16 %v991
    %v1166 = vunpack.c.l.b16 %v992
    %v1167 = vunpack.c.h.b16 %v992
    %v1168 = vunpack.c.l.b16 %v993
    %v1169 = vunpack.c.h.b16 %v993
    %v1170 = vunpack.c.l.b16 %v994
    %v1171 = vunpack.c.h.b16 %v994
    %v1172 = vunpack.c.l.b16 %v995
    %v1173 = vunpack.c.h.b16 %v995
    %v1174 = vunpack.c.l.b16 %v996
    %v1175 = vunpack.c.h.b16 %v996
    %v1176 = vunpack.c.l.b16 %v997
    %v1177 = vunpack.c.h.b16 %v997
    %v1178 = vunpack.c.l.b16 %v998
    %v1179 = vunpack.c.h.b16 %v998
    %v1180 = vunpack.c.l.b16 %v999
    %v1181 = vunpack.c.h.b16 %v999
    %v1182 = vunpack.c.l.b16 %v1000
    %v1183 = vunpack.c.h.b16 %v1000
    %v1184 = vunpack.c.l.b16 %v1001
    %v1185 = vunpack.c.h.b16 %v1001
    %v1186 = vunpack.c.l.b16 %v1002
    %v1187 = vunpack.c.h.b16 %v1002
    %v1188 = vunpack.c.l.b16 %v1003
    %v1189 = vunpack.c.h.b16 %v1003
    %v1190 = vunpack.c.l.b16 %v1004
    %v1191 = vunpack.c.h.b16 %v1004
    %v1192 = vunpack.c.l.b16 %v1005
    %v1193 = vunpack.c.h.b16 %v1005
    %v1194 = vunpack.c.l.b16 %v1006
    %v1195 = vunpack.c.h.b16 %v1006
    %v1196 = vunpack.c.l.b16 %v1007
    %v1197 = vunpack.c.h.b16 %v1007
    %v1198 = vunpack.c.l.b16 %v1008
    %v1199 = vunpack.c.h.b16 %v1008
    %v1200 = vunpack.c.l.b16 %v1009
    %v1201 = vunpack.c.h.b16 %v1009
    %v1202 = vunpack.c.l.b16 %v1010
    %v1203 = vunpack.c.h.b16 %v1010
    %v1204 = vunpack.c.l.b16 %v1011
    %v1205 = vunpack.c.h.b16 %v1011
    %v1206 = vunpack.c.l.b16 %v1012
    %v1207 = vunpack.c.h.b16 %v1012
    %v1208 = vunpack.c.l.b16 %v1013
    %v1209 = vunpack.c.h.b16 %v1013
    %v1210 = vunpack.c.l.b16 %v1014
    %v1211 = vunpack.c.h.b16 %v1014
    %v1212 = vunpack.c.l.b16 %v1015
    %v1213 = vunpack.c.h.b16 %v1015
    %v1214 = vunpack.c.l.b16 %v1016
    %v1215 = vunpack.c.h.b16 %v1016
    %v1216 = vunpack.c.l.b16 %v1017
    %v1217 = vunpack.c.h.b16 %v1017
    %v1218 = vunpack.c.l.b16 %v1018
    %v1219 = vunpack.c.h.b16 %v1018
    %v1220 = vunpack.c.l.b16 %v1019
    %v1221 = vunpack.c.h.b16 %v1019
    %v1222 = vunpack.c.l.b16 %v1020
    %v1223 = vunpack.c.h.b16 %v1020
    %v1224 = vunpack.c.l.b16 %v1021
    %v1225 = vunpack.c.h.b16 %v1021
    %v1226 = vunpack.c.l.b16 %v1022
    %v1227 = vunpack.c.h.b16 %v1022
    %v1228 = vunpack.c.l.b16 %v1023
    %v1229 = vunpack.c.h.b16 %v1023
    %v1230 = vunpack.c.l.b16 %v1024
    %v1231 = vunpack.c.h.b16 %v1024
    %v1232 = vunpack.c.l.b16 %v1025
    %v1233 = vunpack.c.h.b16 %v1025
    %v1234 = vunpack.c.l.b16 %v1026
    %v1235 = vunpack.c.h.b16 %v1026
    %v1236 = vunpack.c.l.b16 %v1027
    %v1237 = vunpack.c.h.b16 %v1027
    %v1238 = vunpack.c.l.b16 %v1028
    %v1239 = vunpack.c.h.b16 %v1028
    %v1240 = vunpack.c.l.b16 %v1029
    %v1241 = vunpack.c.h.b16 %v1029
    %v1242 = vunpack.c.l.b16 %v1030
    %v1243 = vunpack.c.h.b16 %v1030
    %v1244 = vunpack.c.l.b16 %v1031
    %v1245 = vunpack.c.h.b16 %v1031
    %v1246 = vunpack.c.l.b16 %v1032
    %v1247 = vunpack.c.h.b16 %v1032
    %v1248 = vunpack.c.l.b16 %v1033
    %v1249 = vunpack.c.h.b16 %v1033
    %v1250 = vunpack.c.l.b16 %v1034
    %v1251 = vunpack.c.h.b16 %v1034
    %v1252 = vunpack.c.l.b16 %v1035
    %v1253 = vunpack.c.h.b16 %v1035
    %v1254 = vunpack.c.l.b16 %v1036
    %v1255 = vunpack.c.h.b16 %v1036
    %v1256 = vunpack.c.l.b16 %v1037
    %v1257 = vunpack.c.h.b16 %v1037
    %v1258 = vunpack.c.l.b16 %v1038
    %v1259 = vunpack.c.h.b16 %v1038
    %v1260 = vunpack.c.l.b16 %v1039
    %v1261 = vunpack.c.h.b16 %v1039
    %v1262 = vunpack.c.l.b16 %v1040
    %v1263 = vunpack.c.h.b16 %v1040
    %v1264 = vunpack.c.l.b16 %v1041
    %v1265 = vunpack.c.h.b16 %v1041
    %v1266 = vunpack.c.l.b16 %v1042
    %v1267 = vunpack.c.h.b16 %v1042
    %v1268 = vunpack.c.l.b16 %v1043
    %v1269 = vunpack.c.h.b16 %v1043
    %v1270 = vunpack.c.l.b16 %v1044
    %v1271 = vunpack.c.h.b16 %v1044
    %v1272 = vunpack.c.l.b16 %v1045
    %v1273 = vunpack.c.h.b16 %v1045
    %v1274 = vunpack.c.l.b16 %v1046
    %v1275 = vunpack.c.h.b16 %v1046
    %v1276 = vunpack.c.l.b16 %v1047
    %v1277 = vunpack.c.h.b16 %v1047
    %v1278 = vunpack.c.l.b16 %v1048
    %v1279 = vunpack.c.h.b16 %v1048
    %v1280 = vunpack.c.l.b16 %v1049
    %v1281 = vunpack.c.h.b16 %v1049
    %v1282 = vunpack.c.l.b16 %v1050
    %v1283 = vunpack.c.h.b16 %v1050
    %v1284 = vunpack.c.l.b16 %v1051
    %v1285 = vunpack.c.h.b16 %v1051
    %v1286 = vpack.c.b16 %v1166, %v1158
    %v1287 = vpack.c.b16 %v1167, %v1159
    %v1288 = vpack.c.b16 %v1168, %v1160
    %v1289 = vpack.c.b16 %v1169, %v1161
    %v1290 = vpack.c.b16 %v1170, %v1162
    %v1291 = vpack.c.b16 %v1171, %v1163
    %v1292 = vpack.c.b16 %v1172, %v1164
    %v1293 = vpack.c.b16 %v1173, %v1165
    %v1294 = vpack.c.b16 %v1182, %v1174
    %v1295 = vpack.c.b16 %v1183, %v1175
    %v1296 = vpack.c.b16 %v1184, %v1176
    %v1297 = vpack.c.b16 %v1185, %v1177
    %v1298 = vpack.c.b16 %v1186, %v1178
    %v1299 = vpack.c.b16 %v1187, %v1179
    %v1300 = vpack.c.b16 %v1188, %v1180
    %v1301 = vpack.c.b16 %v1189, %v1181
    %v1302 = vpack.c.b16 %v1198, %v1190
    %v1303 = vpack.c.b16 %v1199, %v1191
    %v1304 = vpack.c.b16 %v1200, %v1192
    %v1305 = vpack.c.b16 %v1201, %v1193
    %v1306 = vpack.c.b16 %v1202, %v1194
    %v1307 = vpack.c.b16 %v1203, %v1195
    %v1308 = vpack.c.b16 %v1204, %v1196
    %v1309 = vpack.c.b16 %v1205, %v1197
    %v1310 = vpack.c.b16 %v1214, %v1206
    %v1311 = vpack.c.b16 %v1215, %v1207
    %v1312 = vpack.c.b16 %v1216, %v1208
    %v1313 = vpack.c.b16 %v1217, %v1209
    %v1314 = vpack.c.b16 %v1218, %v1210
    %v1315 = vpack.c.b16 %v1219, %v1211
    %v1316 = vpack.c.b16 %v1220, %v1212
    %v1317 = vpack.c.b16 %v1221, %v1213
    %v1318 = vpack.c.b16 %v1230, %v1222
    %v1319 = vpack.c.b16 %v1231, %v1223
    %v1320 = vpack.c.b16 %v1232, %v1224
    %v1321 = vpack.c.b16 %v1233, %v1225
    %v1322 = vpack.c.b16 %v1234, %v1226
    %v1323 = vpack.c.b16 %v1235, %v1227
    %v1324 = vpack.c.b16 %v1236, %v1228
    %v1325 = vpack.c.b16 %v1237, %v1229
    %v1326 = vpack.c.b16 %v1246, %v1238
    %v1327 = vpack.c.b16 %v1247, %v1239
    %v1328 = vpack.c.b16 %v1248, %v1240
    %v1329 = vpack.c.b16 %v1249, %v1241
    %v1330 = vpack.c.b16 %v1250, %v1242
    %v1331 = vpack.c.b16 %v1251, %v1243
    %v1332 = vpack.c.b16 %v1252, %v1244
    %v1333 = vpack.c.b16 %v1253, %v1245
    %v1334 = vpack.c.b16 %v1262, %v1254
    %v1335 = vpack.c.b16 %v1263, %v1255
    %v1336 = vpack.c.b16 %v1264, %v1256
    %v1337 = vpack.c.b16 %v1265, %v1257
    %v1338 = vpack.c.b16 %v1266, %v1258
    %v1339 = vpack.c.b16 %v1267, %v1259
    %v1340 = vpack.c.b16 %v1268, %v1260
    %v1341 = vpack.c.b16 %v1269, %v1261
    %v1342 = vpack.c.b16 %v1278, %v1270
    %v1343 = vpack.c.b16 %v1279, %v1271
    %v1344 = vpack.c.b16 %v1280, %v1272
    %v1345 = vpack.c.b16 %v1281, %v1273
    %v1346 = vpack.c.b16 %v1282, %v1274
    %v1347 = vpack.c.b16 %v1283, %v1275
    %v1348 = vpack.c.b16 %v1284, %v1276
    %v1349 = vpack.c.b16 %v1285, %v1277
    %1414 = vmatprep.subr.bf16.mxu0 %v1287
    %1415 = vmatpush1.bf16.msra.mxu0 %v1286
    %1416 = vmatprep.subr.bf16.mxu0 %v1295
    %1417 = vmatpush1.bf16.msra.mxu0 %v1294
    %1418 = vmatprep.subr.bf16.mxu0 %v1303
    %1419 = vmatpush1.bf16.msra.mxu0 %v1302
    %1420 = vmatprep.subr.bf16.mxu0 %v1311
    %1421 = vmatpush1.bf16.msra.mxu0 %v1310
    %1422 = vmatprep.subr.bf16.mxu0 %v1319
    %1423 = vmatpush1.bf16.msra.mxu0 %v1318
    %1424 = vmatprep.subr.bf16.mxu0 %v1327
    %1425 = vmatpush1.bf16.msra.mxu0 %v1326
    %1426 = vmatprep.subr.bf16.mxu0 %v1335
    %1427 = vmatpush1.bf16.msra.mxu0 %v1334
    %1428 = vmatprep.subr.bf16.mxu0 %v1343
    %1429 = vmatpush1.bf16.msra.mxu0 %v1342
    %1430 = vmatprep.subr.bf16.mxu0 0
    %1431 = vmatpush1.bf16.msra.mxu0 0
    %1432 = vmatprep.subr.bf16.mxu0 0
    %1433 = vmatpush1.bf16.msra.mxu0 0
    %1434 = vmatprep.subr.bf16.mxu0 0
    %1435 = vmatpush1.bf16.msra.mxu0 0
    %1436 = vmatprep.subr.bf16.mxu0 0
    %1437 = vmatpush1.bf16.msra.mxu0 0
    %1438 = vmatprep.subr.bf16.mxu0 0
    %1439 = vmatpush1.bf16.msra.mxu0 0
    %1440 = vmatprep.subr.bf16.mxu0 0
    %1441 = vmatpush1.bf16.msra.mxu0 0
    %1442 = vmatprep.subr.bf16.mxu0 0
    %1443 = vmatpush1.bf16.msra.mxu0 0
    %1444 = vmatprep.subr.bf16.mxu0 0
    %1445 = vmatpush1.bf16.msra.mxu0 0
    %1446 = vmatprep.mubr.bf16.mxu0 0
    %1447 = vmatmul.mubr.bf16.gmra.mrb[0].mxu0 %v987
    %v1448 = vpop.f32.mrb[0].mxu0
    %v1449 = vadd.f32 %v1057, %v1448
    %v1450 = vpop.f32.mrb[0].mxu0
    %v1451 = vadd.f32 %v1061, %v1450
    %v1452 = vpop.f32.mrb[0].mxu0
    %v1453 = vadd.f32 %v1057, %v1452
    %v1454 = vpop.f32.mrb[0].mxu0
    %v1455 = vadd.f32 %v1061, %v1454
    %1456 = vdwg.mxu0
    %1457 = vmatprep.subr.bf16.mxu0 %v1289
    %1458 = vmatpush1.bf16.msra.mxu0 %v1288
    %1459 = vmatprep.subr.bf16.mxu0 %v1297
    %1460 = vmatpush1.bf16.msra.mxu0 %v1296
    %1461 = vmatprep.subr.bf16.mxu0 %v1305
    %1462 = vmatpush1.bf16.msra.mxu0 %v1304
    %1463 = vmatprep.subr.bf16.mxu0 %v1313
    %1464 = vmatpush1.bf16.msra.mxu0 %v1312
    %1465 = vmatprep.subr.bf16.mxu0 %v1321
    %1466 = vmatpush1.bf16.msra.mxu0 %v1320
    %1467 = vmatprep.subr.bf16.mxu0 %v1329
    %1468 = vmatpush1.bf16.msra.mxu0 %v1328
    %1469 = vmatprep.subr.bf16.mxu0 %v1337
    %1470 = vmatpush1.bf16.msra.mxu0 %v1336
    %1471 = vmatprep.subr.bf16.mxu0 %v1345
    %1472 = vmatpush1.bf16.msra.mxu0 %v1344
    %1473 = vmatprep.subr.bf16.mxu0 0
    %1474 = vmatpush1.bf16.msra.mxu0 0
    %1475 = vmatprep.subr.bf16.mxu0 0
    %1476 = vmatpush1.bf16.msra.mxu0 0
    %1477 = vmatprep.subr.bf16.mxu0 0
    %1478 = vmatpush1.bf16.msra.mxu0 0
    %1479 = vmatprep.subr.bf16.mxu0 0
    %1480 = vmatpush1.bf16.msra.mxu0 0
    %1481 = vmatprep.subr.bf16.mxu0 0
    %1482 = vmatpush1.bf16.msra.mxu0 0
    %1483 = vmatprep.subr.bf16.mxu0 0
    %1484 = vmatpush1.bf16.msra.mxu0 0
    %1485 = vmatprep.subr.bf16.mxu0 0
    %1486 = vmatpush1.bf16.msra.mxu0 0
    %1487 = vmatprep.subr.bf16.mxu0 0
    %1488 = vmatpush1.bf16.msra.mxu0 0
    %1489 = vmatprep.mubr.bf16.mxu0 0
    %1490 = vmatmul.mubr.bf16.gmra.mrb[0].mxu0 %v987
    %v1491 = vpop.f32.mrb[0].mxu0
    %v1492 = vadd.f32 %v1065, %v1491
    %v1493 = vpop.f32.mrb[0].mxu0
    %v1494 = vadd.f32 %v1069, %v1493
    %v1495 = vpop.f32.mrb[0].mxu0
    %v1496 = vadd.f32 %v1065, %v1495
    %v1497 = vpop.f32.mrb[0].mxu0
    %v1498 = vadd.f32 %v1069, %v1497
    %1499 = vdwg.mxu0
    %1500 = vmatprep.subr.bf16.mxu0 %v1291
    %1501 = vmatpush1.bf16.msra.mxu0 %v1290
    %1502 = vmatprep.subr.bf16.mxu0 %v1299
    %1503 = vmatpush1.bf16.msra.mxu0 %v1298
    %1504 = vmatprep.subr.bf16.mxu0 %v1307
    %1505 = vmatpush1.bf16.msra.mxu0 %v1306
    %1506 = vmatprep.subr.bf16.mxu0 %v1315
    %1507 = vmatpush1.bf16.msra.mxu0 %v1314
    %1508 = vmatprep.subr.bf16.mxu0 %v1323
    %1509 = vmatpush1.bf16.msra.mxu0 %v1322
    %1510 = vmatprep.subr.bf16.mxu0 %v1331
    %1511 = vmatpush1.bf16.msra.mxu0 %v1330
    %1512 = vmatprep.subr.bf16.mxu0 %v1339
    %1513 = vmatpush1.bf16.msra.mxu0 %v1338
    %1514 = vmatprep.subr.bf16.mxu0 %v1347
    %1515 = vmatpush1.bf16.msra.mxu0 %v1346
    %1516 = vmatprep.subr.bf16.mxu0 0
    %1517 = vmatpush1.bf16.msra.mxu0 0
    %1518 = vmatprep.subr.bf16.mxu0 0
    %1519 = vmatpush1.bf16.msra.mxu0 0
    %1520 = vmatprep.subr.bf16.mxu0 0
    %1521 = vmatpush1.bf16.msra.mxu0 0
    %1522 = vmatprep.subr.bf16.mxu0 0
    %1523 = vmatpush1.bf16.msra.mxu0 0
    %1524 = vmatprep.subr.bf16.mxu0 0
    %1525 = vmatpush1.bf16.msra.mxu0 0
    %1526 = vmatprep.subr.bf16.mxu0 0
    %1527 = vmatpush1.bf16.msra.mxu0 0
    %1528 = vmatprep.subr.bf16.mxu0 0
    %1529 = vmatpush1.bf16.msra.mxu0 0
    %1530 = vmatprep.subr.bf16.mxu0 0
    %1531 = vmatpush1.bf16.msra.mxu0 0
    %1532 = vmatprep.mubr.bf16.mxu0 0
    %1533 = vmatmul.mubr.bf16.gmra.mrb[0].mxu0 %v987
    %v1534 = vpop.f32.mrb[0].mxu0
    %v1535 = vadd.f32 %v1073, %v1534
    %v1536 = vpop.f32.mrb[0].mxu0
    %v1537 = vadd.f32 %v1077, %v1536
    %v1538 = vpop.f32.mrb[0].mxu0
    %v1539 = vadd.f32 %v1073, %v1538
    %v1540 = vpop.f32.mrb[0].mxu0
    %v1541 = vadd.f32 %v1077, %v1540
    %1542 = vdwg.mxu0
    %1543 = vmatprep.subr.bf16.mxu0 %v1293
    %1544 = vmatpush1.bf16.msra.mxu0 %v1292
    %1545 = vmatprep.subr.bf16.mxu0 %v1301
    %1546 = vmatpush1.bf16.msra.mxu0 %v1300
    %1547 = vmatprep.subr.bf16.mxu0 %v1309
    %1548 = vmatpush1.bf16.msra.mxu0 %v1308
    %1549 = vmatprep.subr.bf16.mxu0 %v1317
    %1550 = vmatpush1.bf16.msra.mxu0 %v1316
    %1551 = vmatprep.subr.bf16.mxu0 %v1325
    %1552 = vmatpush1.bf16.msra.mxu0 %v1324
    %1553 = vmatprep.subr.bf16.mxu0 %v1333
    %1554 = vmatpush1.bf16.msra.mxu0 %v1332
    %1555 = vmatprep.subr.bf16.mxu0 %v1341
    %1556 = vmatpush1.bf16.msra.mxu0 %v1340
    %1557 = vmatprep.subr.bf16.mxu0 %v1349
    %1558 = vmatpush1.bf16.msra.mxu0 %v1348
    %1559 = vmatprep.subr.bf16.mxu0 0
    %1560 = vmatpush1.bf16.msra.mxu0 0
    %1561 = vmatprep.subr.bf16.mxu0 0
    %1562 = vmatpush1.bf16.msra.mxu0 0
    %1563 = vmatprep.subr.bf16.mxu0 0
    %1564 = vmatpush1.bf16.msra.mxu0 0
    %1565 = vmatprep.subr.bf16.mxu0 0
    %1566 = vmatpush1.bf16.msra.mxu0 0
    %1567 = vmatprep.subr.bf16.mxu0 0
    %1568 = vmatpush1.bf16.msra.mxu0 0
    %1569 = vmatprep.subr.bf16.mxu0 0
    %1570 = vmatpush1.bf16.msra.mxu0 0
    %1571 = vmatprep.subr.bf16.mxu0 0
    %1572 = vmatpush1.bf16.msra.mxu0 0
    %1573 = vmatprep.subr.bf16.mxu0 0
    %1574 = vmatpush1.bf16.msra.mxu0 0
    %1575 = vmatprep.mubr.bf16.mxu0 0
    %1576 = vmatmul.mubr.bf16.gmra.mrb[0].mxu0 %v987
    %v1577 = vpop.f32.mrb[0].mxu0
    %v1578 = vadd.f32 %v1081, %v1577
    %v1579 = vpop.f32.mrb[0].mxu0
    %v1580 = vadd.f32 %v1085, %v1579
    %v1581 = vpop.f32.mrb[0].mxu0
    %v1582 = vadd.f32 %v1081, %v1581
    %v1583 = vpop.f32.mrb[0].mxu0
    %v1584 = vadd.f32 %v1085, %v1583
    %1585 = vdwg.mxu0
    %1586 = vst [vmem:[%s10] sm:$0xff] %v1449
    %1587 = vst [vmem:[%s10 + $0x8] sm:$0xff] %v1451
    %1588 = vst [vmem:[%s10 + $0x10] sm:$0xff] %v1492
    %1589 = vst [vmem:[%s10 + $0x18] sm:$0xff] %v1494
    %1590 = vst [vmem:[%s10 + $0x20] sm:$0xff] %v1535
    %1591 = vst [vmem:[%s10 + $0x28] sm:$0xff] %v1537
    %1592 = vst [vmem:[%s10 + $0x30] sm:$0xff] %v1578
    %1593 = vst [vmem:[%s10 + $0x38] sm:$0xff] %v1580
    %1594 = vst [vmem:[%s10 + $0x40] sm:$0xff] %v1453
    %1595 = vst [vmem:[%s10 + $0x48] sm:$0xff] %v1455
    %1596 = vst [vmem:[%s10 + $0x50] sm:$0xff] %v1496
    %1597 = vst [vmem:[%s10 + $0x58] sm:$0xff] %v1498
    %1598 = vst [vmem:[%s10 + $0x60] sm:$0xff] %v1539
    %1599 = vst [vmem:[%s10 + $0x68] sm:$0xff] %v1541
    %1600 = vst [vmem:[%s10 + $0x70] sm:$0xff] %v1582
    %1601 = vst [vmem:[%s10 + $0x78] sm:$0xff] %v1584
    %vm1602 = vcmask 523264
    %1603 = vst.msk [vmem:[%s11] sm:$0xff] %vm1602, %v882
    %1604 = vst.msk [vmem:[%s11 + $0x8] sm:$0xff] %vm1602, %v885
    %1607 = vrot.lane.b32.xlu0 %v914, 64
    %v1608 = vpop.permute.xlu0 %1607
    %1609 = vrot.lane.b32.xlu0 %v915, 64
    %v1610 = vpop.permute.xlu0 %1609
    %vm1613 = vcmask 785920
    %1614 = vst.msk [vmem:[%s11] sm:$0xff] %vm1613, %v1608
    %1615 = vst.msk [vmem:[%s11 + $0x8] sm:$0xff] %vm1613, %v1610
    %1618 = vrot.lane.b32.xlu0 %v891, 64
    %v1619 = vpop.permute.xlu0 %1618
    %1620 = vrot.lane.b32.xlu0 %v893, 64
    %v1621 = vpop.permute.xlu0 %1620
    %vm1624 = vcmask 1048320
    %1625 = vst.msk [vmem:[%s11] sm:$0xff] %vm1624, %v1619
    %1626 = vst.msk [vmem:[%s11 + $0x8] sm:$0xff] %vm1624, %v1621
    // Predicated region
    $region50: #{_student_forward.1} parent=1 // pred_check
      _
    $region51: #{_student_forward.1} parent=1 // pred_check_branch
      %1628 = sbr.rel (0) target = $region53
    $region52: #{_student_forward.1} parent=1 // pred_region
      _
    $region53: #{_student_forward.1} parent=1 // pred_fallthru
      _
    // Predicated region
    $region54: #{_student_forward.1} parent=1 // pred_check
      _
    $region55: #{_student_forward.1} parent=1 // pred_check_branch
      %1630 = sbr.rel (0) target = $region57
    $region56: #{_student_forward.1} parent=1 // pred_region
      _
    $region57: #{_student_forward.1} parent=1 // pred_fallthru
      _
    // Predicated region
    $region58: #{_student_forward.1} parent=1 // pred_check
      _
    $region59: #{_student_forward.1} parent=1 // pred_check_branch
      %1632 = sbr.rel (0) target = $region61
    $region60: #{_student_forward.1} parent=1 // pred_region
      _
    $region61: #{_student_forward.1} parent=1 // pred_fallthru
      _
    // Predicated region
    $region62: #{_student_forward.1} parent=1 // pred_check
      _
    $region63: #{_student_forward.1} parent=1 // pred_check_branch
      %1634 = sbr.rel (0) target = $region65
    $region64: #{_student_forward.1} parent=1 // pred_region
      _
    $region65: #{_student_forward.1} parent=1 // pred_fallthru
      _
    %1635 = vsyncpa [#allocation3], 1
    %1636 = vsyncpa [#allocation5], 1

</llo_original>
